<compile_context>
chip_gen: v7x
topology: tpu7x:2x2x1
jax: 0.10.0
libtpu: 0.0.40
codegen_flags: <defaults>
</compile_context>

<pallas_src>
import functools

import jax
import jax.numpy as jnp
from jax.experimental import pallas as pl
from jax.experimental.pallas import tpu as pltpu

BN_EPS = 1e-5


def _sigmoid(z):
    # Exact sigmoid via tanh: the transcendental runs on the EUP, no VALU divide.
    return 0.5 * jnp.tanh(0.5 * z) + 0.5


def _div_mod(idx, seg):
    # idx // seg, idx % seg with a shift/and fast path for power-of-two seg.
    if seg & (seg - 1) == 0:
        sh = seg.bit_length() - 1
        return jnp.right_shift(idx, sh), jnp.bitwise_and(idx, seg - 1)
    return idx // seg, idx % seg


# --------------------------------- kernel -----------------------------------

def server_kernel(x_ref, wb1_ref, wb2_ref, fc_ref, out_ref, *, n, seg, k):
    """ConvNormPool x2 -> avgpool -> fc -> sigmoid, all samples at once.

    Shapes (all f32):
      x_ref   : (Cin, N*S)                 one length-S segment per sample
      wb1_ref : (H1, K*Cin + 2*K*H1 + 9)   block1 slab [w1 | w2 | w3 | vec]
      wb2_ref : (H2, K*H1  + 2*K*H2 + 9)   block2 slab [w1 | w2 | w3 | vec]
      fc_ref  : (NCp, H2+1)                [W_fc | b_fc], rows padded to 8
      out_ref : (NCp, N)
    vec columns: [b1 g1 be1 b2 g2 be2 b3 g3 be3] (conv bias / BN gamma / beta).
    """
    cin = x_ref.shape[0]
    h1 = wb1_ref.shape[0]
    h2 = wb2_ref.shape[0]
    ns = x_ref.shape[1]
    lo = seg - k + 1                        # valid conv-output length per sample
    inv_cnt = 1.0 / float(n * lo)           # BN batch-stat count (valid lanes)

    # Masks / pooling matrix generated in-kernel (no constant DMAs).
    q = jax.lax.broadcasted_iota(jnp.int32, (1, ns), 1)
    _, qmod = _div_mod(q, seg)
    valid = (qmod < lo).astype(jnp.float32)         # (1, NS) valid conv outputs
    padm = (qmod >= k - 1).astype(jnp.float32)      # (1, NS) non-pad lanes
    prow = jax.lax.broadcasted_iota(jnp.int32, (ns, n), 0)
    pcol = jax.lax.broadcasted_iota(jnp.int32, (ns, n), 1)
    pdiv, pmod = _div_mod(prow, seg)
    pool = jnp.where((pdiv == pcol) & (pmod < lo), 1.0 / seg, 0.0)      # (NS, N)

    def conv(x, wcol):
        # im2col over taps: K full-width lane rolls stacked on the sublane
        # axis, contracted in ONE MXU matmul.  Wrapped lanes always land on
        # invalid (masked) columns, so no per-tap fixup is needed.
        taps = [x] + [pltpu.roll(x, shift=ns - d, axis=1) for d in range(1, k)]
        xcol = jnp.concatenate(taps, axis=0)                      # (K*Cx, NS)
        return jnp.dot(wcol, xcol, preferred_element_type=jnp.float32)

    def bn_swish(y, gamma, beta):
        # Training-mode BatchNorm1d (biased variance) over valid lanes only,
        # single pass (both cross-lane reductions issue back-to-back), + Swish.
        ym = y * valid
        s1 = jnp.sum(ym, axis=1, keepdims=True)
        s2 = jnp.sum(ym * y, axis=1, keepdims=True)
        mean = s1 * inv_cnt
        var = s2 * inv_cnt - mean * mean
        z = (y - mean) * jax.lax.rsqrt(var + BN_EPS) * gamma + beta
        return z * _sigmoid(z)

    def pad_left(h):
        # Per-sample F.pad(h, (K-1, 0)): XLU lane roll + VPU mask multiply.
        # Valid columns shift into padded position; everything the roll wraps
        # or drags across a segment boundary lands exactly on a mask=0 lane.
        return pltpu.roll(h, shift=k - 1, axis=1) * padm

    def block(x, wb_ref, ci, co):
        o1 = k * ci
        o2 = o1 + k * co
        o3 = o2 + k * co
        w1 = wb_ref[:, 0:o1]                              # (co, K*ci)
        w2 = wb_ref[:, o1:o2]                             # (co, K*co)
        w3 = wb_ref[:, o2:o3]                             # (co, K*co)
        vec = wb_ref[:, o3:o3 + 9]                        # (co, 9), loaded once
        b1, g1, be1 = vec[:, 0:1], vec[:, 1:2], vec[:, 2:3]
        b2, g2, be2 = vec[:, 3:4], vec[:, 4:5], vec[:, 5:6]
        b3, g3, be3 = vec[:, 6:7], vec[:, 7:8], vec[:, 8:9]
        c1 = conv(x, w1) + b1                             # (co, NS)
        h = pad_left(bn_swish(c1, g1, be1))
        h = pad_left(bn_swish(conv(h, w2) + b2, g2, be2))
        c3 = conv(h, w3) + b3
        return bn_swish(c1 + c3, g3, be3)                 # un-padded, (co, NS)

    h = pad_left(block(x_ref[...], wb1_ref, cin, h1))     # (H1, NS)
    h = block(h, wb2_ref, h1, h2)                         # (H2, NS)

    # AdaptiveAvgPool1d(1) over the padded per-sample length: the pool matrix
    # already zeroes invalid lanes and divides by S (padded zeros contribute 0),
    # then Linear + sigmoid.
    pooled = jnp.dot(h, pool, preferred_element_type=jnp.float32)       # (H2, N)
    fc = fc_ref[...]
    logits = jnp.dot(fc[:, :h2], pooled,
                     preferred_element_type=jnp.float32) + fc[:, h2:]
    out_ref[...] = _sigmoid(logits)                       # (NCp, N), one store


# ------------------------------ host wrapper --------------------------------

def _wcol(w):
    # (Cout, Cin, K) -> (Cout, K*Cin) with column index d*Cin + ci = w[co, ci, d].
    co, ci, k = w.shape
    return jnp.transpose(w, (0, 2, 1)).reshape(co, k * ci)


def _block_slab(p):
    vec = jnp.stack([p['b1'], p['g1'], p['be1'],
                     p['b2'], p['g2'], p['be2'],
                     p['b3'], p['g3'], p['be3']], axis=1)             # (Cout, 9)
    return jnp.concatenate(
        [_wcol(p['w1']), _wcol(p['w2']), _wcol(p['w3']), vec], axis=1)


def server_forward(x, params):
    n, cin, seg = x.shape
    nc, _h2 = params['wfc'].shape
    k = params['block1']['w1'].shape[2]
    ns = n * seg

    # Batched lane-major activation: (Cin, N*S), one segment per sample.
    x2d = jnp.transpose(x, (1, 0, 2)).reshape(cin, ns)

    # One packed weight slab per ConvNormPool block + one FC slab => 4 DMAs.
    wb1 = _block_slab(params['block1'])
    wb2 = _block_slab(params['block2'])
    ncp = ((nc + 7) // 8) * 8
    fc = jnp.concatenate([params['wfc'], params['bfc'][:, None]], axis=1)
    fc = jnp.pad(fc, ((0, ncp - nc), (0, 0)))

    kernel = functools.partial(server_kernel, n=n, seg=seg, k=k)
    out = pl.pallas_call(
        kernel,
        out_shape=jax.ShapeDtypeStruct((ncp, n), jnp.float32),
        in_specs=[pl.BlockSpec(memory_space=pltpu.MemorySpace.VMEM)] * 4,
        out_specs=pl.BlockSpec(memory_space=pltpu.MemorySpace.VMEM),
    )(x2d, wb1, wb2, fc)
    return out[:nc].T                                                 # (N, NC)


# ----------------------- deterministic parameter init -----------------------

def init_params(key, cin, h1, h2, k, nc):
    keys = iter(jax.random.split(key, 40))

    def w(shape, scale=0.1, shift=0.0):
        return shift + scale * jax.random.normal(next(keys), shape, jnp.float32)

    def block(ci, co):
        d = {}
        d['w1'] = w((co, ci, k)); d['b1'] = w((co,))
        d['g1'] = w((co,), shift=1.0); d['be1'] = w((co,))
        d['w2'] = w((co, co, k)); d['b2'] = w((co,))
        d['g2'] = w((co,), shift=1.0); d['be2'] = w((co,))
        d['w3'] = w((co, co, k)); d['b3'] = w((co,))
        d['g3'] = w((co,), shift=1.0); d['be3'] = w((co,))
        return d

    return dict(block1=block(cin, h1), block2=block(h1, h2),
                wfc=w((nc, h2)), bfc=w((nc,)))


# --------------------------- pure-JAX reference -----------------------------
# Full-f32 precision so the comparison reflects the kernel, not XLA's default
# reduced-precision f32 matmul path on TPU.

def _conv1d_ref(x, wt, b):
    y = jax.lax.conv_general_dilated(
        x, wt, (1,), 'VALID',
        dimension_numbers=('NCH', 'OIH', 'NCH'),
        precision=jax.lax.Precision.HIGHEST)
    return y + b[None, :, None]


def _bn_swish_ref(x, g, b):
    mean = x.mean(axis=(0, 2), keepdims=True)
    var = ((x - mean) ** 2).mean(axis=(0, 2), keepdims=True)
    z = (x - mean) * jax.lax.rsqrt(var + BN_EPS) * g[None, :, None] + b[None, :, None]
    return z * jax.nn.sigmoid(z)


def _block_ref(x, p, k):
    c1 = _conv1d_ref(x, p['w1'], p['b1'])
    h = _bn_swish_ref(c1, p['g1'], p['be1'])
    h = jnp.pad(h, ((0, 0), (0, 0), (k - 1, 0)))
    h = _conv1d_ref(h, p['w2'], p['b2'])
    h = _bn_swish_ref(h, p['g2'], p['be2'])
    h = jnp.pad(h, ((0, 0), (0, 0), (k - 1, 0)))
    c3 = _conv1d_ref(h, p['w3'], p['b3'])
    h = _bn_swish_ref(c1 + c3, p['g3'], p['be3'])
    return jnp.pad(h, ((0, 0), (0, 0), (k - 1, 0)))


def server_ref(x, params, k):
    h = _block_ref(x, params['block1'], k)
    h = _block_ref(h, params['block2'], k)
    pooled = h.mean(axis=2)
    logits = jnp.dot(pooled, params['wfc'].T,
                     precision=jax.lax.Precision.HIGHEST) + params['bfc']
    return jax.nn.sigmoid(logits)


# ----------------------------------- main ------------------------------------

if __name__ == "__main__":
    # Small-but-consistent shapes: Server(input_size=32, hid_size=32,
    # kernel_size=5, num_classes=5)  ->  H1 = 16, H2 = 8.
    # N * L = 128 so the batched activation fills exactly one lane row.
    N, CIN, L = 4, 32, 32
    H1, H2, K, NC = 16, 8, 5, 5

    key = jax.random.PRNGKey(0)
    kx, kp = jax.random.split(key)
    x = jax.random.normal(kx, (N, CIN, L), jnp.float32)
    params = init_params(kp, CIN, H1, H2, K, NC)

    y = server_forward(x, params)
    y = jax.block_until_ready(y)

    y_ref = server_ref(x, params, K)
    assert y.shape == (N, NC)
    # Tolerance absorbs MXU multi-pass / summation-order differences while
    # still catching any layout, mask or roll-direction error (those are O(0.1)).
    assert bool(jnp.allclose(y, y_ref, atol=1e-3, rtol=1e-3)), (y, y_ref)

    print("KERNEL_OK")
</pallas_src>

<mosaic_0001>
module attributes {stable_mosaic.version = 11 : i64} {
  func.func @server_kernel(%arg0: memref<32x128xf32, #tpu.memory_space<vmem>>, %arg1: memref<16x329xf32, #tpu.memory_space<vmem>>, %arg2: memref<8x169xf32, #tpu.memory_space<vmem>>, %arg3: memref<8x9xf32, #tpu.memory_space<vmem>>, %arg4: memref<8x4xf32, #tpu.memory_space<vmem>>) attributes {dimension_semantics = [], scalar_prefetch = 0 : i64, scratch_operands = 0 : i64, tpu.core_type = #tpu.core_type<tc>} {
    %0 = tpu.iota {dimensions = array<i32: 1>} : vector<1x128xi32>
    %c31_i32 = arith.constant 31 : i32
    %1 = vector.broadcast %c31_i32 : i32 to vector<1x128xi32>
    %2 = arith.andi %0, %1 : vector<1x128xi32>
    %c28_i32 = arith.constant 28 : i32
    %3 = vector.broadcast %c28_i32 : i32 to vector<1x128xi32>
    %4 = arith.cmpi slt, %2, %3 : vector<1x128xi32>
    %5 = arith.extui %4 : vector<1x128xi1> to vector<1x128xi32>
    %6 = arith.sitofp %5 : vector<1x128xi32> to vector<1x128xf32>
    %c4_i32 = arith.constant 4 : i32
    %7 = vector.broadcast %c4_i32 : i32 to vector<1x128xi32>
    %8 = arith.cmpi sge, %2, %7 : vector<1x128xi32>
    %9 = arith.extui %8 : vector<1x128xi1> to vector<1x128xi32>
    %10 = arith.sitofp %9 : vector<1x128xi32> to vector<1x128xf32>
    %11 = tpu.iota {dimensions = array<i32: 0>} : vector<128x4xi32>
    %12 = tpu.iota {dimensions = array<i32: 1>} : vector<128x4xi32>
    %c5_i32 = arith.constant 5 : i32
    %13 = vector.broadcast %c5_i32 : i32 to vector<128x4xi32>
    %14 = arith.shrsi %11, %13 : vector<128x4xi32>
    %c31_i32_0 = arith.constant 31 : i32
    %15 = vector.broadcast %c31_i32_0 : i32 to vector<128x4xi32>
    %16 = arith.andi %11, %15 : vector<128x4xi32>
    %17 = arith.cmpi eq, %14, %12 : vector<128x4xi32>
    %c28_i32_1 = arith.constant 28 : i32
    %18 = vector.broadcast %c28_i32_1 : i32 to vector<128x4xi32>
    %19 = arith.cmpi slt, %16, %18 : vector<128x4xi32>
    %20 = arith.andi %17, %19 : vector<128x4xi1>
    %cst = arith.constant 3.125000e-02 : f32
    %cst_2 = arith.constant 0.000000e+00 : f32
    %21 = vector.broadcast %cst : f32 to vector<128x4xf32>
    %22 = vector.broadcast %cst_2 : f32 to vector<128x4xf32>
    %23 = arith.select %20, %21, %22 : vector<128x4xi1>, vector<128x4xf32>
    %c0 = arith.constant 0 : index
    %c0_3 = arith.constant 0 : index
    %24 = vector.load %arg0[%c0, %c0_3] : memref<32x128xf32, #tpu.memory_space<vmem>>, vector<32x128xf32>
    %c0_4 = arith.constant 0 : index
    %c0_5 = arith.constant 0 : index
    %25 = vector.load %arg1[%c0_4, %c0_5] : memref<16x329xf32, #tpu.memory_space<vmem>>, vector<16x160xf32>
    %c0_6 = arith.constant 0 : index
    %c160 = arith.constant 160 : index
    %26 = vector.load %arg1[%c0_6, %c160] : memref<16x329xf32, #tpu.memory_space<vmem>>, vector<16x80xf32>
    %c0_7 = arith.constant 0 : index
    %c240 = arith.constant 240 : index
    %27 = vector.load %arg1[%c0_7, %c240] : memref<16x329xf32, #tpu.memory_space<vmem>>, vector<16x80xf32>
    %c0_8 = arith.constant 0 : index
    %c320 = arith.constant 320 : index
    %28 = vector.load %arg1[%c0_8, %c320] : memref<16x329xf32, #tpu.memory_space<vmem>>, vector<16x9xf32>
    %29 = vector.extract_strided_slice %28 {offsets = [0, 0], sizes = [16, 1], strides = [1, 1]} : vector<16x9xf32> to vector<16x1xf32>
    %30 = vector.extract_strided_slice %28 {offsets = [0, 1], sizes = [16, 1], strides = [1, 1]} : vector<16x9xf32> to vector<16x1xf32>
    %31 = vector.extract_strided_slice %28 {offsets = [0, 2], sizes = [16, 1], strides = [1, 1]} : vector<16x9xf32> to vector<16x1xf32>
    %32 = vector.extract_strided_slice %28 {offsets = [0, 3], sizes = [16, 1], strides = [1, 1]} : vector<16x9xf32> to vector<16x1xf32>
    %33 = vector.extract_strided_slice %28 {offsets = [0, 4], sizes = [16, 1], strides = [1, 1]} : vector<16x9xf32> to vector<16x1xf32>
    %34 = vector.extract_strided_slice %28 {offsets = [0, 5], sizes = [16, 1], strides = [1, 1]} : vector<16x9xf32> to vector<16x1xf32>
    %35 = vector.extract_strided_slice %28 {offsets = [0, 6], sizes = [16, 1], strides = [1, 1]} : vector<16x9xf32> to vector<16x1xf32>
    %36 = vector.extract_strided_slice %28 {offsets = [0, 7], sizes = [16, 1], strides = [1, 1]} : vector<16x9xf32> to vector<16x1xf32>
    %37 = vector.extract_strided_slice %28 {offsets = [0, 8], sizes = [16, 1], strides = [1, 1]} : vector<16x9xf32> to vector<16x1xf32>
    %c127_i32 = arith.constant 127 : i32
    %38 = tpu.dynamic_rotate %24 by %c127_i32 dim 1 : vector<32x128xf32>, i32 -> vector<32x128xf32>
    %c126_i32 = arith.constant 126 : i32
    %39 = tpu.dynamic_rotate %24 by %c126_i32 dim 1 : vector<32x128xf32>, i32 -> vector<32x128xf32>
    %c125_i32 = arith.constant 125 : i32
    %40 = tpu.dynamic_rotate %24 by %c125_i32 dim 1 : vector<32x128xf32>, i32 -> vector<32x128xf32>
    %c124_i32 = arith.constant 124 : i32
    %41 = tpu.dynamic_rotate %24 by %c124_i32 dim 1 : vector<32x128xf32>, i32 -> vector<32x128xf32>
    %42 = tpu.concatenate %24, %38, %39, %40, %41 in 0 : vector<32x128xf32>, vector<32x128xf32>, vector<32x128xf32>, vector<32x128xf32>, vector<32x128xf32> -> vector<160x128xf32>
    %cst_9 = arith.constant dense<0.000000e+00> : vector<16x128xf32>
    %43 = tpu.matmul %25, %42, %cst_9 {dimension_numbers = #tpu.dot_dimension_numbers<[1], [0], [0], [1], [0, 0, 1, 1], [], []>} : vector<16x160xf32>, vector<160x128xf32>, vector<16x128xf32> -> vector<16x128xf32>
    %44 = vector.broadcast %29 : vector<16x1xf32> to vector<16x128xf32>
    %45 = arith.addf %43, %44 : vector<16x128xf32>
    %46 = vector.broadcast %6 : vector<1x128xf32> to vector<16x128xf32>
    %47 = arith.mulf %45, %46 : vector<16x128xf32>
    %cst_10 = arith.constant dense<0.000000e+00> : vector<16xf32>
    %48 = vector.multi_reduction <add>, %47, %cst_10 [1] : vector<16x128xf32> to vector<16xf32>
    %49 = vector.shape_cast %48 : vector<16xf32> to vector<16x1xf32>
    %50 = arith.mulf %47, %45 : vector<16x128xf32>
    %cst_11 = arith.constant dense<0.000000e+00> : vector<16xf32>
    %51 = vector.multi_reduction <add>, %50, %cst_11 [1] : vector<16x128xf32> to vector<16xf32>
    %52 = vector.shape_cast %51 : vector<16xf32> to vector<16x1xf32>
    %cst_12 = arith.constant 0.00892857183 : f32
    %53 = vector.broadcast %cst_12 : f32 to vector<16x1xf32>
    %54 = arith.mulf %49, %53 : vector<16x1xf32>
    %cst_13 = arith.constant 0.00892857183 : f32
    %55 = vector.broadcast %cst_13 : f32 to vector<16x1xf32>
    %56 = arith.mulf %52, %55 : vector<16x1xf32>
    %57 = arith.mulf %54, %54 : vector<16x1xf32>
    %58 = arith.subf %56, %57 : vector<16x1xf32>
    %59 = vector.broadcast %54 : vector<16x1xf32> to vector<16x128xf32>
    %60 = arith.subf %45, %59 : vector<16x128xf32>
    %cst_14 = arith.constant 9.99999974E-6 : f32
    %61 = vector.broadcast %cst_14 : f32 to vector<16x1xf32>
    %62 = arith.addf %58, %61 : vector<16x1xf32>
    %63 = math.rsqrt %62 : vector<16x1xf32>
    %64 = vector.broadcast %63 : vector<16x1xf32> to vector<16x128xf32>
    %65 = arith.mulf %60, %64 : vector<16x128xf32>
    %66 = vector.broadcast %30 : vector<16x1xf32> to vector<16x128xf32>
    %67 = arith.mulf %65, %66 : vector<16x128xf32>
    %68 = vector.broadcast %31 : vector<16x1xf32> to vector<16x128xf32>
    %69 = arith.addf %67, %68 : vector<16x128xf32>
    %cst_15 = arith.constant 5.000000e-01 : f32
    %70 = vector.broadcast %cst_15 : f32 to vector<16x128xf32>
    %71 = arith.mulf %70, %69 : vector<16x128xf32>
    %72 = math.tanh %71 : vector<16x128xf32>
    %cst_16 = arith.constant 5.000000e-01 : f32
    %73 = vector.broadcast %cst_16 : f32 to vector<16x128xf32>
    %74 = arith.mulf %73, %72 : vector<16x128xf32>
    %cst_17 = arith.constant 5.000000e-01 : f32
    %75 = vector.broadcast %cst_17 : f32 to vector<16x128xf32>
    %76 = arith.addf %74, %75 : vector<16x128xf32>
    %77 = arith.mulf %69, %76 : vector<16x128xf32>
    %c4_i32_18 = arith.constant 4 : i32
    %78 = tpu.dynamic_rotate %77 by %c4_i32_18 dim 1 : vector<16x128xf32>, i32 -> vector<16x128xf32>
    %79 = vector.broadcast %10 : vector<1x128xf32> to vector<16x128xf32>
    %80 = arith.mulf %78, %79 : vector<16x128xf32>
    %c127_i32_19 = arith.constant 127 : i32
    %81 = tpu.dynamic_rotate %80 by %c127_i32_19 dim 1 : vector<16x128xf32>, i32 -> vector<16x128xf32>
    %c126_i32_20 = arith.constant 126 : i32
    %82 = tpu.dynamic_rotate %80 by %c126_i32_20 dim 1 : vector<16x128xf32>, i32 -> vector<16x128xf32>
    %c125_i32_21 = arith.constant 125 : i32
    %83 = tpu.dynamic_rotate %80 by %c125_i32_21 dim 1 : vector<16x128xf32>, i32 -> vector<16x128xf32>
    %c124_i32_22 = arith.constant 124 : i32
    %84 = tpu.dynamic_rotate %80 by %c124_i32_22 dim 1 : vector<16x128xf32>, i32 -> vector<16x128xf32>
    %85 = tpu.concatenate %80, %81, %82, %83, %84 in 0 : vector<16x128xf32>, vector<16x128xf32>, vector<16x128xf32>, vector<16x128xf32>, vector<16x128xf32> -> vector<80x128xf32>
    %cst_23 = arith.constant dense<0.000000e+00> : vector<16x128xf32>
    %86 = tpu.matmul %26, %85, %cst_23 {dimension_numbers = #tpu.dot_dimension_numbers<[1], [0], [0], [1], [0, 0, 1, 1], [], []>} : vector<16x80xf32>, vector<80x128xf32>, vector<16x128xf32> -> vector<16x128xf32>
    %87 = vector.broadcast %32 : vector<16x1xf32> to vector<16x128xf32>
    %88 = arith.addf %86, %87 : vector<16x128xf32>
    %89 = vector.broadcast %6 : vector<1x128xf32> to vector<16x128xf32>
    %90 = arith.mulf %88, %89 : vector<16x128xf32>
    %cst_24 = arith.constant dense<0.000000e+00> : vector<16xf32>
    %91 = vector.multi_reduction <add>, %90, %cst_24 [1] : vector<16x128xf32> to vector<16xf32>
    %92 = vector.shape_cast %91 : vector<16xf32> to vector<16x1xf32>
    %93 = arith.mulf %90, %88 : vector<16x128xf32>
    %cst_25 = arith.constant dense<0.000000e+00> : vector<16xf32>
    %94 = vector.multi_reduction <add>, %93, %cst_25 [1] : vector<16x128xf32> to vector<16xf32>
    %95 = vector.shape_cast %94 : vector<16xf32> to vector<16x1xf32>
    %cst_26 = arith.constant 0.00892857183 : f32
    %96 = vector.broadcast %cst_26 : f32 to vector<16x1xf32>
    %97 = arith.mulf %92, %96 : vector<16x1xf32>
    %cst_27 = arith.constant 0.00892857183 : f32
    %98 = vector.broadcast %cst_27 : f32 to vector<16x1xf32>
    %99 = arith.mulf %95, %98 : vector<16x1xf32>
    %100 = arith.mulf %97, %97 : vector<16x1xf32>
    %101 = arith.subf %99, %100 : vector<16x1xf32>
    %102 = vector.broadcast %97 : vector<16x1xf32> to vector<16x128xf32>
    %103 = arith.subf %88, %102 : vector<16x128xf32>
    %cst_28 = arith.constant 9.99999974E-6 : f32
    %104 = vector.broadcast %cst_28 : f32 to vector<16x1xf32>
    %105 = arith.addf %101, %104 : vector<16x1xf32>
    %106 = math.rsqrt %105 : vector<16x1xf32>
    %107 = vector.broadcast %106 : vector<16x1xf32> to vector<16x128xf32>
    %108 = arith.mulf %103, %107 : vector<16x128xf32>
    %109 = vector.broadcast %33 : vector<16x1xf32> to vector<16x128xf32>
    %110 = arith.mulf %108, %109 : vector<16x128xf32>
    %111 = vector.broadcast %34 : vector<16x1xf32> to vector<16x128xf32>
    %112 = arith.addf %110, %111 : vector<16x128xf32>
    %cst_29 = arith.constant 5.000000e-01 : f32
    %113 = vector.broadcast %cst_29 : f32 to vector<16x128xf32>
    %114 = arith.mulf %113, %112 : vector<16x128xf32>
    %115 = math.tanh %114 : vector<16x128xf32>
    %cst_30 = arith.constant 5.000000e-01 : f32
    %116 = vector.broadcast %cst_30 : f32 to vector<16x128xf32>
    %117 = arith.mulf %116, %115 : vector<16x128xf32>
    %cst_31 = arith.constant 5.000000e-01 : f32
    %118 = vector.broadcast %cst_31 : f32 to vector<16x128xf32>
    %119 = arith.addf %117, %118 : vector<16x128xf32>
    %120 = arith.mulf %112, %119 : vector<16x128xf32>
    %c4_i32_32 = arith.constant 4 : i32
    %121 = tpu.dynamic_rotate %120 by %c4_i32_32 dim 1 : vector<16x128xf32>, i32 -> vector<16x128xf32>
    %122 = vector.broadcast %10 : vector<1x128xf32> to vector<16x128xf32>
    %123 = arith.mulf %121, %122 : vector<16x128xf32>
    %c127_i32_33 = arith.constant 127 : i32
    %124 = tpu.dynamic_rotate %123 by %c127_i32_33 dim 1 : vector<16x128xf32>, i32 -> vector<16x128xf32>
    %c126_i32_34 = arith.constant 126 : i32
    %125 = tpu.dynamic_rotate %123 by %c126_i32_34 dim 1 : vector<16x128xf32>, i32 -> vector<16x128xf32>
    %c125_i32_35 = arith.constant 125 : i32
    %126 = tpu.dynamic_rotate %123 by %c125_i32_35 dim 1 : vector<16x128xf32>, i32 -> vector<16x128xf32>
    %c124_i32_36 = arith.constant 124 : i32
    %127 = tpu.dynamic_rotate %123 by %c124_i32_36 dim 1 : vector<16x128xf32>, i32 -> vector<16x128xf32>
    %128 = tpu.concatenate %123, %124, %125, %126, %127 in 0 : vector<16x128xf32>, vector<16x128xf32>, vector<16x128xf32>, vector<16x128xf32>, vector<16x128xf32> -> vector<80x128xf32>
    %cst_37 = arith.constant dense<0.000000e+00> : vector<16x128xf32>
    %129 = tpu.matmul %27, %128, %cst_37 {dimension_numbers = #tpu.dot_dimension_numbers<[1], [0], [0], [1], [0, 0, 1, 1], [], []>} : vector<16x80xf32>, vector<80x128xf32>, vector<16x128xf32> -> vector<16x128xf32>
    %130 = vector.broadcast %35 : vector<16x1xf32> to vector<16x128xf32>
    %131 = arith.addf %129, %130 : vector<16x128xf32>
    %132 = arith.addf %45, %131 : vector<16x128xf32>
    %133 = vector.broadcast %6 : vector<1x128xf32> to vector<16x128xf32>
    %134 = arith.mulf %132, %133 : vector<16x128xf32>
    %cst_38 = arith.constant dense<0.000000e+00> : vector<16xf32>
    %135 = vector.multi_reduction <add>, %134, %cst_38 [1] : vector<16x128xf32> to vector<16xf32>
    %136 = vector.shape_cast %135 : vector<16xf32> to vector<16x1xf32>
    %137 = arith.mulf %134, %132 : vector<16x128xf32>
    %cst_39 = arith.constant dense<0.000000e+00> : vector<16xf32>
    %138 = vector.multi_reduction <add>, %137, %cst_39 [1] : vector<16x128xf32> to vector<16xf32>
    %139 = vector.shape_cast %138 : vector<16xf32> to vector<16x1xf32>
    %cst_40 = arith.constant 0.00892857183 : f32
    %140 = vector.broadcast %cst_40 : f32 to vector<16x1xf32>
    %141 = arith.mulf %136, %140 : vector<16x1xf32>
    %cst_41 = arith.constant 0.00892857183 : f32
    %142 = vector.broadcast %cst_41 : f32 to vector<16x1xf32>
    %143 = arith.mulf %139, %142 : vector<16x1xf32>
    %144 = arith.mulf %141, %141 : vector<16x1xf32>
    %145 = arith.subf %143, %144 : vector<16x1xf32>
    %146 = vector.broadcast %141 : vector<16x1xf32> to vector<16x128xf32>
    %147 = arith.subf %132, %146 : vector<16x128xf32>
    %cst_42 = arith.constant 9.99999974E-6 : f32
    %148 = vector.broadcast %cst_42 : f32 to vector<16x1xf32>
    %149 = arith.addf %145, %148 : vector<16x1xf32>
    %150 = math.rsqrt %149 : vector<16x1xf32>
    %151 = vector.broadcast %150 : vector<16x1xf32> to vector<16x128xf32>
    %152 = arith.mulf %147, %151 : vector<16x128xf32>
    %153 = vector.broadcast %36 : vector<16x1xf32> to vector<16x128xf32>
    %154 = arith.mulf %152, %153 : vector<16x128xf32>
    %155 = vector.broadcast %37 : vector<16x1xf32> to vector<16x128xf32>
    %156 = arith.addf %154, %155 : vector<16x128xf32>
    %cst_43 = arith.constant 5.000000e-01 : f32
    %157 = vector.broadcast %cst_43 : f32 to vector<16x128xf32>
    %158 = arith.mulf %157, %156 : vector<16x128xf32>
    %159 = math.tanh %158 : vector<16x128xf32>
    %cst_44 = arith.constant 5.000000e-01 : f32
    %160 = vector.broadcast %cst_44 : f32 to vector<16x128xf32>
    %161 = arith.mulf %160, %159 : vector<16x128xf32>
    %cst_45 = arith.constant 5.000000e-01 : f32
    %162 = vector.broadcast %cst_45 : f32 to vector<16x128xf32>
    %163 = arith.addf %161, %162 : vector<16x128xf32>
    %164 = arith.mulf %156, %163 : vector<16x128xf32>
    %c4_i32_46 = arith.constant 4 : i32
    %165 = tpu.dynamic_rotate %164 by %c4_i32_46 dim 1 : vector<16x128xf32>, i32 -> vector<16x128xf32>
    %166 = vector.broadcast %10 : vector<1x128xf32> to vector<16x128xf32>
    %167 = arith.mulf %165, %166 : vector<16x128xf32>
    %c0_47 = arith.constant 0 : index
    %c0_48 = arith.constant 0 : index
    %168 = vector.load %arg2[%c0_47, %c0_48] : memref<8x169xf32, #tpu.memory_space<vmem>>, vector<8x80xf32>
    %c0_49 = arith.constant 0 : index
    %c80 = arith.constant 80 : index
    %169 = vector.load %arg2[%c0_49, %c80] : memref<8x169xf32, #tpu.memory_space<vmem>>, vector<8x40xf32>
    %c0_50 = arith.constant 0 : index
    %c120 = arith.constant 120 : index
    %170 = vector.load %arg2[%c0_50, %c120] : memref<8x169xf32, #tpu.memory_space<vmem>>, vector<8x40xf32>
    %c0_51 = arith.constant 0 : index
    %c160_52 = arith.constant 160 : index
    %171 = vector.load %arg2[%c0_51, %c160_52] : memref<8x169xf32, #tpu.memory_space<vmem>>, vector<8x9xf32>
    %172 = vector.extract_strided_slice %171 {offsets = [0, 0], sizes = [8, 1], strides = [1, 1]} : vector<8x9xf32> to vector<8x1xf32>
    %173 = vector.extract_strided_slice %171 {offsets = [0, 1], sizes = [8, 1], strides = [1, 1]} : vector<8x9xf32> to vector<8x1xf32>
    %174 = vector.extract_strided_slice %171 {offsets = [0, 2], sizes = [8, 1], strides = [1, 1]} : vector<8x9xf32> to vector<8x1xf32>
    %175 = vector.extract_strided_slice %171 {offsets = [0, 3], sizes = [8, 1], strides = [1, 1]} : vector<8x9xf32> to vector<8x1xf32>
    %176 = vector.extract_strided_slice %171 {offsets = [0, 4], sizes = [8, 1], strides = [1, 1]} : vector<8x9xf32> to vector<8x1xf32>
    %177 = vector.extract_strided_slice %171 {offsets = [0, 5], sizes = [8, 1], strides = [1, 1]} : vector<8x9xf32> to vector<8x1xf32>
    %178 = vector.extract_strided_slice %171 {offsets = [0, 6], sizes = [8, 1], strides = [1, 1]} : vector<8x9xf32> to vector<8x1xf32>
    %179 = vector.extract_strided_slice %171 {offsets = [0, 7], sizes = [8, 1], strides = [1, 1]} : vector<8x9xf32> to vector<8x1xf32>
    %180 = vector.extract_strided_slice %171 {offsets = [0, 8], sizes = [8, 1], strides = [1, 1]} : vector<8x9xf32> to vector<8x1xf32>
    %c127_i32_53 = arith.constant 127 : i32
    %181 = tpu.dynamic_rotate %167 by %c127_i32_53 dim 1 : vector<16x128xf32>, i32 -> vector<16x128xf32>
    %c126_i32_54 = arith.constant 126 : i32
    %182 = tpu.dynamic_rotate %167 by %c126_i32_54 dim 1 : vector<16x128xf32>, i32 -> vector<16x128xf32>
    %c125_i32_55 = arith.constant 125 : i32
    %183 = tpu.dynamic_rotate %167 by %c125_i32_55 dim 1 : vector<16x128xf32>, i32 -> vector<16x128xf32>
    %c124_i32_56 = arith.constant 124 : i32
    %184 = tpu.dynamic_rotate %167 by %c124_i32_56 dim 1 : vector<16x128xf32>, i32 -> vector<16x128xf32>
    %185 = tpu.concatenate %167, %181, %182, %183, %184 in 0 : vector<16x128xf32>, vector<16x128xf32>, vector<16x128xf32>, vector<16x128xf32>, vector<16x128xf32> -> vector<80x128xf32>
    %cst_57 = arith.constant dense<0.000000e+00> : vector<8x128xf32>
    %186 = tpu.matmul %168, %185, %cst_57 {dimension_numbers = #tpu.dot_dimension_numbers<[1], [0], [0], [1], [0, 0, 1, 1], [], []>} : vector<8x80xf32>, vector<80x128xf32>, vector<8x128xf32> -> vector<8x128xf32>
    %187 = vector.broadcast %172 : vector<8x1xf32> to vector<8x128xf32>
    %188 = arith.addf %186, %187 : vector<8x128xf32>
    %189 = vector.broadcast %6 : vector<1x128xf32> to vector<8x128xf32>
    %190 = arith.mulf %188, %189 : vector<8x128xf32>
    %cst_58 = arith.constant dense<0.000000e+00> : vector<8xf32>
    %191 = vector.multi_reduction <add>, %190, %cst_58 [1] : vector<8x128xf32> to vector<8xf32>
    %192 = vector.shape_cast %191 : vector<8xf32> to vector<8x1xf32>
    %193 = arith.mulf %190, %188 : vector<8x128xf32>
    %cst_59 = arith.constant dense<0.000000e+00> : vector<8xf32>
    %194 = vector.multi_reduction <add>, %193, %cst_59 [1] : vector<8x128xf32> to vector<8xf32>
    %195 = vector.shape_cast %194 : vector<8xf32> to vector<8x1xf32>
    %cst_60 = arith.constant 0.00892857183 : f32
    %196 = vector.broadcast %cst_60 : f32 to vector<8x1xf32>
    %197 = arith.mulf %192, %196 : vector<8x1xf32>
    %cst_61 = arith.constant 0.00892857183 : f32
    %198 = vector.broadcast %cst_61 : f32 to vector<8x1xf32>
    %199 = arith.mulf %195, %198 : vector<8x1xf32>
    %200 = arith.mulf %197, %197 : vector<8x1xf32>
    %201 = arith.subf %199, %200 : vector<8x1xf32>
    %202 = vector.broadcast %197 : vector<8x1xf32> to vector<8x128xf32>
    %203 = arith.subf %188, %202 : vector<8x128xf32>
    %cst_62 = arith.constant 9.99999974E-6 : f32
    %204 = vector.broadcast %cst_62 : f32 to vector<8x1xf32>
    %205 = arith.addf %201, %204 : vector<8x1xf32>
    %206 = math.rsqrt %205 : vector<8x1xf32>
    %207 = vector.broadcast %206 : vector<8x1xf32> to vector<8x128xf32>
    %208 = arith.mulf %203, %207 : vector<8x128xf32>
    %209 = vector.broadcast %173 : vector<8x1xf32> to vector<8x128xf32>
    %210 = arith.mulf %208, %209 : vector<8x128xf32>
    %211 = vector.broadcast %174 : vector<8x1xf32> to vector<8x128xf32>
    %212 = arith.addf %210, %211 : vector<8x128xf32>
    %cst_63 = arith.constant 5.000000e-01 : f32
    %213 = vector.broadcast %cst_63 : f32 to vector<8x128xf32>
    %214 = arith.mulf %213, %212 : vector<8x128xf32>
    %215 = math.tanh %214 : vector<8x128xf32>
    %cst_64 = arith.constant 5.000000e-01 : f32
    %216 = vector.broadcast %cst_64 : f32 to vector<8x128xf32>
    %217 = arith.mulf %216, %215 : vector<8x128xf32>
    %cst_65 = arith.constant 5.000000e-01 : f32
    %218 = vector.broadcast %cst_65 : f32 to vector<8x128xf32>
    %219 = arith.addf %217, %218 : vector<8x128xf32>
    %220 = arith.mulf %212, %219 : vector<8x128xf32>
    %c4_i32_66 = arith.constant 4 : i32
    %221 = tpu.dynamic_rotate %220 by %c4_i32_66 dim 1 : vector<8x128xf32>, i32 -> vector<8x128xf32>
    %222 = vector.broadcast %10 : vector<1x128xf32> to vector<8x128xf32>
    %223 = arith.mulf %221, %222 : vector<8x128xf32>
    %c127_i32_67 = arith.constant 127 : i32
    %224 = tpu.dynamic_rotate %223 by %c127_i32_67 dim 1 : vector<8x128xf32>, i32 -> vector<8x128xf32>
    %c126_i32_68 = arith.constant 126 : i32
    %225 = tpu.dynamic_rotate %223 by %c126_i32_68 dim 1 : vector<8x128xf32>, i32 -> vector<8x128xf32>
    %c125_i32_69 = arith.constant 125 : i32
    %226 = tpu.dynamic_rotate %223 by %c125_i32_69 dim 1 : vector<8x128xf32>, i32 -> vector<8x128xf32>
    %c124_i32_70 = arith.constant 124 : i32
    %227 = tpu.dynamic_rotate %223 by %c124_i32_70 dim 1 : vector<8x128xf32>, i32 -> vector<8x128xf32>
    %228 = tpu.concatenate %223, %224, %225, %226, %227 in 0 : vector<8x128xf32>, vector<8x128xf32>, vector<8x128xf32>, vector<8x128xf32>, vector<8x128xf32> -> vector<40x128xf32>
    %cst_71 = arith.constant dense<0.000000e+00> : vector<8x128xf32>
    %229 = tpu.matmul %169, %228, %cst_71 {dimension_numbers = #tpu.dot_dimension_numbers<[1], [0], [0], [1], [0, 0, 1, 1], [], []>} : vector<8x40xf32>, vector<40x128xf32>, vector<8x128xf32> -> vector<8x128xf32>
    %230 = vector.broadcast %175 : vector<8x1xf32> to vector<8x128xf32>
    %231 = arith.addf %229, %230 : vector<8x128xf32>
    %232 = vector.broadcast %6 : vector<1x128xf32> to vector<8x128xf32>
    %233 = arith.mulf %231, %232 : vector<8x128xf32>
    %cst_72 = arith.constant dense<0.000000e+00> : vector<8xf32>
    %234 = vector.multi_reduction <add>, %233, %cst_72 [1] : vector<8x128xf32> to vector<8xf32>
    %235 = vector.shape_cast %234 : vector<8xf32> to vector<8x1xf32>
    %236 = arith.mulf %233, %231 : vector<8x128xf32>
    %cst_73 = arith.constant dense<0.000000e+00> : vector<8xf32>
    %237 = vector.multi_reduction <add>, %236, %cst_73 [1] : vector<8x128xf32> to vector<8xf32>
    %238 = vector.shape_cast %237 : vector<8xf32> to vector<8x1xf32>
    %cst_74 = arith.constant 0.00892857183 : f32
    %239 = vector.broadcast %cst_74 : f32 to vector<8x1xf32>
    %240 = arith.mulf %235, %239 : vector<8x1xf32>
    %cst_75 = arith.constant 0.00892857183 : f32
    %241 = vector.broadcast %cst_75 : f32 to vector<8x1xf32>
    %242 = arith.mulf %238, %241 : vector<8x1xf32>
    %243 = arith.mulf %240, %240 : vector<8x1xf32>
    %244 = arith.subf %242, %243 : vector<8x1xf32>
    %245 = vector.broadcast %240 : vector<8x1xf32> to vector<8x128xf32>
    %246 = arith.subf %231, %245 : vector<8x128xf32>
    %cst_76 = arith.constant 9.99999974E-6 : f32
    %247 = vector.broadcast %cst_76 : f32 to vector<8x1xf32>
    %248 = arith.addf %244, %247 : vector<8x1xf32>
    %249 = math.rsqrt %248 : vector<8x1xf32>
    %250 = vector.broadcast %249 : vector<8x1xf32> to vector<8x128xf32>
    %251 = arith.mulf %246, %250 : vector<8x128xf32>
    %252 = vector.broadcast %176 : vector<8x1xf32> to vector<8x128xf32>
    %253 = arith.mulf %251, %252 : vector<8x128xf32>
    %254 = vector.broadcast %177 : vector<8x1xf32> to vector<8x128xf32>
    %255 = arith.addf %253, %254 : vector<8x128xf32>
    %cst_77 = arith.constant 5.000000e-01 : f32
    %256 = vector.broadcast %cst_77 : f32 to vector<8x128xf32>
    %257 = arith.mulf %256, %255 : vector<8x128xf32>
    %258 = math.tanh %257 : vector<8x128xf32>
    %cst_78 = arith.constant 5.000000e-01 : f32
    %259 = vector.broadcast %cst_78 : f32 to vector<8x128xf32>
    %260 = arith.mulf %259, %258 : vector<8x128xf32>
    %cst_79 = arith.constant 5.000000e-01 : f32
    %261 = vector.broadcast %cst_79 : f32 to vector<8x128xf32>
    %262 = arith.addf %260, %261 : vector<8x128xf32>
    %263 = arith.mulf %255, %262 : vector<8x128xf32>
    %c4_i32_80 = arith.constant 4 : i32
    %264 = tpu.dynamic_rotate %263 by %c4_i32_80 dim 1 : vector<8x128xf32>, i32 -> vector<8x128xf32>
    %265 = vector.broadcast %10 : vector<1x128xf32> to vector<8x128xf32>
    %266 = arith.mulf %264, %265 : vector<8x128xf32>
    %c127_i32_81 = arith.constant 127 : i32
    %267 = tpu.dynamic_rotate %266 by %c127_i32_81 dim 1 : vector<8x128xf32>, i32 -> vector<8x128xf32>
    %c126_i32_82 = arith.constant 126 : i32
    %268 = tpu.dynamic_rotate %266 by %c126_i32_82 dim 1 : vector<8x128xf32>, i32 -> vector<8x128xf32>
    %c125_i32_83 = arith.constant 125 : i32
    %269 = tpu.dynamic_rotate %266 by %c125_i32_83 dim 1 : vector<8x128xf32>, i32 -> vector<8x128xf32>
    %c124_i32_84 = arith.constant 124 : i32
    %270 = tpu.dynamic_rotate %266 by %c124_i32_84 dim 1 : vector<8x128xf32>, i32 -> vector<8x128xf32>
    %271 = tpu.concatenate %266, %267, %268, %269, %270 in 0 : vector<8x128xf32>, vector<8x128xf32>, vector<8x128xf32>, vector<8x128xf32>, vector<8x128xf32> -> vector<40x128xf32>
    %cst_85 = arith.constant dense<0.000000e+00> : vector<8x128xf32>
    %272 = tpu.matmul %170, %271, %cst_85 {dimension_numbers = #tpu.dot_dimension_numbers<[1], [0], [0], [1], [0, 0, 1, 1], [], []>} : vector<8x40xf32>, vector<40x128xf32>, vector<8x128xf32> -> vector<8x128xf32>
    %273 = vector.broadcast %178 : vector<8x1xf32> to vector<8x128xf32>
    %274 = arith.addf %272, %273 : vector<8x128xf32>
    %275 = arith.addf %188, %274 : vector<8x128xf32>
    %276 = vector.broadcast %6 : vector<1x128xf32> to vector<8x128xf32>
    %277 = arith.mulf %275, %276 : vector<8x128xf32>
    %cst_86 = arith.constant dense<0.000000e+00> : vector<8xf32>
    %278 = vector.multi_reduction <add>, %277, %cst_86 [1] : vector<8x128xf32> to vector<8xf32>
    %279 = vector.shape_cast %278 : vector<8xf32> to vector<8x1xf32>
    %280 = arith.mulf %277, %275 : vector<8x128xf32>
    %cst_87 = arith.constant dense<0.000000e+00> : vector<8xf32>
    %281 = vector.multi_reduction <add>, %280, %cst_87 [1] : vector<8x128xf32> to vector<8xf32>
    %282 = vector.shape_cast %281 : vector<8xf32> to vector<8x1xf32>
    %cst_88 = arith.constant 0.00892857183 : f32
    %283 = vector.broadcast %cst_88 : f32 to vector<8x1xf32>
    %284 = arith.mulf %279, %283 : vector<8x1xf32>
    %cst_89 = arith.constant 0.00892857183 : f32
    %285 = vector.broadcast %cst_89 : f32 to vector<8x1xf32>
    %286 = arith.mulf %282, %285 : vector<8x1xf32>
    %287 = arith.mulf %284, %284 : vector<8x1xf32>
    %288 = arith.subf %286, %287 : vector<8x1xf32>
    %289 = vector.broadcast %284 : vector<8x1xf32> to vector<8x128xf32>
    %290 = arith.subf %275, %289 : vector<8x128xf32>
    %cst_90 = arith.constant 9.99999974E-6 : f32
    %291 = vector.broadcast %cst_90 : f32 to vector<8x1xf32>
    %292 = arith.addf %288, %291 : vector<8x1xf32>
    %293 = math.rsqrt %292 : vector<8x1xf32>
    %294 = vector.broadcast %293 : vector<8x1xf32> to vector<8x128xf32>
    %295 = arith.mulf %290, %294 : vector<8x128xf32>
    %296 = vector.broadcast %179 : vector<8x1xf32> to vector<8x128xf32>
    %297 = arith.mulf %295, %296 : vector<8x128xf32>
    %298 = vector.broadcast %180 : vector<8x1xf32> to vector<8x128xf32>
    %299 = arith.addf %297, %298 : vector<8x128xf32>
    %cst_91 = arith.constant 5.000000e-01 : f32
    %300 = vector.broadcast %cst_91 : f32 to vector<8x128xf32>
    %301 = arith.mulf %300, %299 : vector<8x128xf32>
    %302 = math.tanh %301 : vector<8x128xf32>
    %cst_92 = arith.constant 5.000000e-01 : f32
    %303 = vector.broadcast %cst_92 : f32 to vector<8x128xf32>
    %304 = arith.mulf %303, %302 : vector<8x128xf32>
    %cst_93 = arith.constant 5.000000e-01 : f32
    %305 = vector.broadcast %cst_93 : f32 to vector<8x128xf32>
    %306 = arith.addf %304, %305 : vector<8x128xf32>
    %307 = arith.mulf %299, %306 : vector<8x128xf32>
    %cst_94 = arith.constant dense<0.000000e+00> : vector<8x4xf32>
    %308 = tpu.matmul %307, %23, %cst_94 {dimension_numbers = #tpu.dot_dimension_numbers<[1], [0], [0], [1], [0, 0, 1, 1], [], []>} : vector<8x128xf32>, vector<128x4xf32>, vector<8x4xf32> -> vector<8x4xf32>
    %c0_95 = arith.constant 0 : index
    %c0_96 = arith.constant 0 : index
    %309 = vector.load %arg3[%c0_95, %c0_96] : memref<8x9xf32, #tpu.memory_space<vmem>>, vector<8x9xf32>
    %310 = vector.extract_strided_slice %309 {offsets = [0, 0], sizes = [8, 8], strides = [1, 1]} : vector<8x9xf32> to vector<8x8xf32>
    %cst_97 = arith.constant dense<0.000000e+00> : vector<8x4xf32>
    %311 = tpu.matmul %310, %308, %cst_97 {dimension_numbers = #tpu.dot_dimension_numbers<[1], [0], [0], [1], [0, 0, 1, 1], [], []>} : vector<8x8xf32>, vector<8x4xf32>, vector<8x4xf32> -> vector<8x4xf32>
    %312 = vector.extract_strided_slice %309 {offsets = [0, 8], sizes = [8, 1], strides = [1, 1]} : vector<8x9xf32> to vector<8x1xf32>
    %313 = vector.broadcast %312 : vector<8x1xf32> to vector<8x4xf32>
    %314 = arith.addf %311, %313 : vector<8x4xf32>
    %cst_98 = arith.constant 5.000000e-01 : f32
    %315 = vector.broadcast %cst_98 : f32 to vector<8x4xf32>
    %316 = arith.mulf %315, %314 : vector<8x4xf32>
    %317 = math.tanh %316 : vector<8x4xf32>
    %cst_99 = arith.constant 5.000000e-01 : f32
    %318 = vector.broadcast %cst_99 : f32 to vector<8x4xf32>
    %319 = arith.mulf %318, %317 : vector<8x4xf32>
    %cst_100 = arith.constant 5.000000e-01 : f32
    %320 = vector.broadcast %cst_100 : f32 to vector<8x4xf32>
    %321 = arith.addf %319, %320 : vector<8x4xf32>
    %c0_101 = arith.constant 0 : index
    %c0_102 = arith.constant 0 : index
    %322 = vector.load %arg4[%c0_101, %c0_102] : memref<8x4xf32, #tpu.memory_space<vmem>>, vector<8x4xf32>
    tpu.vector_store %arg4[%c0_101, %c0_102], %321 {strides = array<i32>} : memref<8x4xf32, #tpu.memory_space<vmem>>, vector<8x4xf32>,
    return
  }
}

</mosaic_0001>

<llo_original>
// kernel: tpu_custom_call.1
$region0: #{tpu_custom_call.1}
  #allocation0 [shape = 'u32[]', space=smem, size = 0x4, offset = 0x4, fixed_abs, tag = 'smem constant byte address 0x4 - core index']
  #allocation1 [shape = 'u32[144,128]{1,0:T(1,128)}', space=vmem, size = 0x12000, scoped, tag = 'internal scratch']
  %s0 = inlined_call_operand.hbm [shape: f32[32,128], index: 0, kind: input, shape index: {}]
  %s1 = inlined_call_operand.hbm [shape: f32[16,329], index: 1, kind: input, shape index: {}]
  %s2 = inlined_call_operand.hbm [shape: f32[8,169], index: 2, kind: input, shape index: {}]
  %s3 = inlined_call_operand.vmem [shape: f32[8,9], index: 3, kind: input, shape index: {}]
  %s4 = inlined_call_operand.vmem [shape: f32[8,4], index: 4, kind: output, shape index: {}]
  %s5 = sld [smem:[#allocation0]]
  $region38: #{tpu_custom_call.1} parent=0
    _
  %s7 = ssub.s32 1, %s5
  %s8 = scalar_select 0, %s7, %s5
  $region1: #{tpu_custom_call.1} parent=0
    #allocation2 [shape = 'u8[16384]{0}', space=vmem, size = 0x4000, scoped, tag = 'input window, operand 0, single buffered']
    #allocation3 [shape = 's32[1]{0}', space=sflag, size = 0x4, scoped, tag = 'scoped memory for tpu_custom_call.1']
    #allocation4 [shape = 'u8[24576]{0}', space=vmem, size = 0x6000, scoped, tag = 'input window, operand 1, single buffered']
    #allocation5 [shape = 's32[1]{0}', space=sflag, size = 0x4, scoped, tag = 'scoped memory for tpu_custom_call.1']
    #allocation6 [shape = 'u8[8192]{0}', space=vmem, size = 0x2000, scoped, tag = 'input window, operand 2, single buffered']
    %9 = vsyncpa [#allocation3], 0
    %10 = vsyncpa [#allocation5], 0
    // Predicated region
    $region2: #{tpu_custom_call.1} parent=1 // pred_check
      _
    $region3: #{tpu_custom_call.1} parent=1 // pred_check_branch
      %12 = sbr.rel (0) target = $region5
    $region4: #{tpu_custom_call.1} parent=1 // pred_region
      %s14 = ssub.s32 512, 512
      %15 = vsyncadd [#allocation3], %s14
      %s16 = sshll.u32 [#allocation2], 4
      %s17 = int_to_ptr.vmem [resolvable:$true] %s16
      %22 = dma.hbm_to_vmem [thread:$0]  %s0, 512, %s17, [#allocation3], 128, 128, 8
    $region5: #{tpu_custom_call.1} parent=1 // pred_fallthru
      _
    // Predicated region
    $region6: #{tpu_custom_call.1} parent=1 // pred_check
      _
    $region7: #{tpu_custom_call.1} parent=1 // pred_check_branch
      %24 = sbr.rel (0) target = $region9
    $region8: #{tpu_custom_call.1} parent=1 // pred_region
      %s26 = ssub.s32 768, 768
      %27 = vsyncadd [#allocation5], %s26
      %s28 = sshll.u32 [#allocation4], 4
      %s29 = int_to_ptr.vmem [resolvable:$true] %s28
      %34 = dma.hbm_to_vmem [thread:$0]  %s1, 768, %s29, [#allocation5], 384, 384, 24
    $region9: #{tpu_custom_call.1} parent=1 // pred_fallthru
      _
    // Predicated region
    $region10: #{tpu_custom_call.1} parent=1 // pred_check
      _
    $region11: #{tpu_custom_call.1} parent=1 // pred_check_branch
      %36 = sbr.rel (0) target = $region13
    $region12: #{tpu_custom_call.1} parent=1 // pred_region
      %s38 = ssub.s32 256, 256
      %39 = vsyncadd [#allocation5], %s38
      %s41 = sshll.u32 [#allocation6], 4
      %s42 = int_to_ptr.vmem [resolvable:$true] %s41
      %44 = dma.hbm_to_vmem [thread:$0]  %s2, 256, %s42, [#allocation5]
    $region13: #{tpu_custom_call.1} parent=1 // pred_fallthru
      _
    // Predicated region
    $region14: #{tpu_custom_call.1} parent=1 // pred_check
      _
    $region15: #{tpu_custom_call.1} parent=1 // pred_check_branch
      %46 = sbr.rel (0) target = $region17
    $region16: #{tpu_custom_call.1} parent=1 // pred_region
      _
    $region17: #{tpu_custom_call.1} parent=1 // pred_fallthru
      _
    // Predicated region
    $region18: #{tpu_custom_call.1} parent=1 // pred_check
      _
    $region19: #{tpu_custom_call.1} parent=1 // pred_check_branch
      %48 = sbr.rel (0) target = $region21
    $region20: #{tpu_custom_call.1} parent=1 // pred_region
      %49 = dma.done [#allocation3], 512
    $region21: #{tpu_custom_call.1} parent=1 // pred_fallthru
      _
    // Predicated region
    $region22: #{tpu_custom_call.1} parent=1 // pred_check
      _
    $region23: #{tpu_custom_call.1} parent=1 // pred_check_branch
      %51 = sbr.rel (0) target = $region25
    $region24: #{tpu_custom_call.1} parent=1 // pred_region
      %52 = dma.done [#allocation5], 768
    $region25: #{tpu_custom_call.1} parent=1 // pred_fallthru
      _
    // Predicated region
    $region26: #{tpu_custom_call.1} parent=1 // pred_check
      _
    $region27: #{tpu_custom_call.1} parent=1 // pred_check_branch
      %54 = sbr.rel (0) target = $region29
    $region28: #{tpu_custom_call.1} parent=1 // pred_region
      %55 = dma.done [#allocation5], 256
    $region29: #{tpu_custom_call.1} parent=1 // pred_fallthru
      _
    %v56 = vlaneseq
    %v57 = vand.u32 %v56, 127
    %v58 = vand.u32 %v57, 31
    %vm59 = vcmp.lt.s32.totalorder %v58, 28
    %v60 = vsel %vm59, 1, 0
    %v61 = vcvt.s32.f32 %v60
    %vm62 = vcmp.ge.s32.totalorder %v58, 4
    %v63 = vsel %vm62, 1, 0
    %v64 = vcvt.s32.f32 %v63
    %v65 = vlaneseq
    %v66 = vshrl.u32 %v65, 7
    %v67 = vadd.s32 %v66, 8
    %v68 = vadd.s32 %v66, 16
    %v69 = vadd.s32 %v66, 24
    %v70 = vadd.s32 %v66, 32
    %v71 = vadd.s32 %v66, 40
    %v72 = vadd.s32 %v66, 48
    %v73 = vadd.s32 %v66, 56
    %v74 = vadd.s32 %v66, 64
    %v75 = vadd.s32 %v66, 72
    %v76 = vadd.s32 %v66, 80
    %v77 = vadd.s32 %v66, 88
    %v78 = vadd.s32 %v66, 96
    %v79 = vadd.s32 %v66, 104
    %v80 = vadd.s32 %v66, 112
    %v81 = vadd.s32 %v66, 120
    %v82 = vshra.s32 %v66, 5
    %v83 = vshra.s32 %v67, 5
    %v84 = vshra.s32 %v68, 5
    %v85 = vshra.s32 %v69, 5
    %v86 = vshra.s32 %v70, 5
    %v87 = vshra.s32 %v71, 5
    %v88 = vshra.s32 %v72, 5
    %v89 = vshra.s32 %v73, 5
    %v90 = vshra.s32 %v74, 5
    %v91 = vshra.s32 %v75, 5
    %v92 = vshra.s32 %v76, 5
    %v93 = vshra.s32 %v77, 5
    %v94 = vshra.s32 %v78, 5
    %v95 = vshra.s32 %v79, 5
    %v96 = vshra.s32 %v80, 5
    %v97 = vshra.s32 %v81, 5
    %v98 = vand.u32 %v66, 31
    %v99 = vand.u32 %v67, 31
    %v100 = vand.u32 %v68, 31
    %v101 = vand.u32 %v69, 31
    %v102 = vand.u32 %v70, 31
    %v103 = vand.u32 %v71, 31
    %v104 = vand.u32 %v72, 31
    %v105 = vand.u32 %v73, 31
    %v106 = vand.u32 %v74, 31
    %v107 = vand.u32 %v75, 31
    %v108 = vand.u32 %v76, 31
    %v109 = vand.u32 %v77, 31
    %v110 = vand.u32 %v78, 31
    %v111 = vand.u32 %v79, 31
    %v112 = vand.u32 %v80, 31
    %v113 = vand.u32 %v81, 31
    %vm114 = vcmp.eq.s32.totalorder %v82, %v57
    %vm115 = vcmp.eq.s32.totalorder %v83, %v57
    %vm116 = vcmp.eq.s32.totalorder %v84, %v57
    %vm117 = vcmp.eq.s32.totalorder %v85, %v57
    %vm118 = vcmp.eq.s32.totalorder %v86, %v57
    %vm119 = vcmp.eq.s32.totalorder %v87, %v57
    %vm120 = vcmp.eq.s32.totalorder %v88, %v57
    %vm121 = vcmp.eq.s32.totalorder %v89, %v57
    %vm122 = vcmp.eq.s32.totalorder %v90, %v57
    %vm123 = vcmp.eq.s32.totalorder %v91, %v57
    %vm124 = vcmp.eq.s32.totalorder %v92, %v57
    %vm125 = vcmp.eq.s32.totalorder %v93, %v57
    %vm126 = vcmp.eq.s32.totalorder %v94, %v57
    %vm127 = vcmp.eq.s32.totalorder %v95, %v57
    %vm128 = vcmp.eq.s32.totalorder %v96, %v57
    %vm129 = vcmp.eq.s32.totalorder %v97, %v57
    %vm130 = vcmp.lt.s32.totalorder %v98, 28
    %vm131 = vcmp.lt.s32.totalorder %v99, 28
    %vm132 = vcmp.lt.s32.totalorder %v100, 28
    %vm133 = vcmp.lt.s32.totalorder %v101, 28
    %vm134 = vcmp.lt.s32.totalorder %v102, 28
    %vm135 = vcmp.lt.s32.totalorder %v103, 28
    %vm136 = vcmp.lt.s32.totalorder %v104, 28
    %vm137 = vcmp.lt.s32.totalorder %v105, 28
    %vm138 = vcmp.lt.s32.totalorder %v106, 28
    %vm139 = vcmp.lt.s32.totalorder %v107, 28
    %vm140 = vcmp.lt.s32.totalorder %v108, 28
    %vm141 = vcmp.lt.s32.totalorder %v109, 28
    %vm142 = vcmp.lt.s32.totalorder %v110, 28
    %vm143 = vcmp.lt.s32.totalorder %v111, 28
    %vm144 = vcmp.lt.s32.totalorder %v112, 28
    %vm145 = vcmp.lt.s32.totalorder %v113, 28
    %vm146 = vmand %vm114, %vm130
    %vm147 = vmand %vm115, %vm131
    %vm148 = vmand %vm116, %vm132
    %vm149 = vmand %vm117, %vm133
    %vm150 = vmand %vm118, %vm134
    %vm151 = vmand %vm119, %vm135
    %vm152 = vmand %vm120, %vm136
    %vm153 = vmand %vm121, %vm137
    %vm154 = vmand %vm122, %vm138
    %vm155 = vmand %vm123, %vm139
    %vm156 = vmand %vm124, %vm140
    %vm157 = vmand %vm125, %vm141
    %vm158 = vmand %vm126, %vm142
    %vm159 = vmand %vm127, %vm143
    %vm160 = vmand %vm128, %vm144
    %vm161 = vmand %vm129, %vm145
    %v162 = vsel %vm146, 0.03125, 0.0
    %v163 = vsel %vm147, 0.03125, 0.0
    %v164 = vsel %vm148, 0.03125, 0.0
    %v165 = vsel %vm149, 0.03125, 0.0
    %v166 = vsel %vm150, 0.03125, 0.0
    %v167 = vsel %vm151, 0.03125, 0.0
    %v168 = vsel %vm152, 0.03125, 0.0
    %v169 = vsel %vm153, 0.03125, 0.0
    %v170 = vsel %vm154, 0.03125, 0.0
    %v171 = vsel %vm155, 0.03125, 0.0
    %v172 = vsel %vm156, 0.03125, 0.0
    %v173 = vsel %vm157, 0.03125, 0.0
    %v174 = vsel %vm158, 0.03125, 0.0
    %v175 = vsel %vm159, 0.03125, 0.0
    %v176 = vsel %vm160, 0.03125, 0.0
    %v177 = vsel %vm161, 0.03125, 0.0
    %v178 = vld [vmem:[#allocation2] sm:$0xff]
    %v179 = vld [vmem:[#allocation2 + $0x8] sm:$0xff]
    %v180 = vld [vmem:[#allocation2 + $0x10] sm:$0xff]
    %v181 = vld [vmem:[#allocation2 + $0x18] sm:$0xff]
    %v182 = vld [vmem:[#allocation4] sm:$0xff]
    %v183 = vld [vmem:[#allocation4 + $0x8] sm:$0xff]
    %v184 = vld [vmem:[#allocation4 + $0x18] sm:$0xff]
    %v185 = vld [vmem:[#allocation4 + $0x20] sm:$0xff]
    %v186 = vld [vmem:[#allocation4 + $0x10] sm:$0xff]
    %v187 = vld [vmem:[#allocation4 + $0x28] sm:$0xff]
    %188 = vrot.lane.b32.xlu0 %v178, 127
    %v189 = vpop.permute.xlu0 %188
    %190 = vrot.lane.b32.xlu0 %v179, 127
    %v191 = vpop.permute.xlu0 %190
    %192 = vrot.lane.b32.xlu0 %v180, 127
    %v193 = vpop.permute.xlu0 %192
    %194 = vrot.lane.b32.xlu0 %v181, 127
    %v195 = vpop.permute.xlu0 %194
    %196 = vrot.lane.b32.xlu0 %v178, 126
    %v197 = vpop.permute.xlu0 %196
    %198 = vrot.lane.b32.xlu0 %v179, 126
    %v199 = vpop.permute.xlu0 %198
    %200 = vrot.lane.b32.xlu0 %v180, 126
    %v201 = vpop.permute.xlu0 %200
    %202 = vrot.lane.b32.xlu0 %v181, 126
    %v203 = vpop.permute.xlu0 %202
    %204 = vrot.lane.b32.xlu0 %v178, 125
    %v205 = vpop.permute.xlu0 %204
    %206 = vrot.lane.b32.xlu0 %v179, 125
    %v207 = vpop.permute.xlu0 %206
    %208 = vrot.lane.b32.xlu0 %v180, 125
    %v209 = vpop.permute.xlu0 %208
    %210 = vrot.lane.b32.xlu0 %v181, 125
    %v211 = vpop.permute.xlu0 %210
    %212 = vrot.lane.b32.xlu0 %v178, 124
    %v213 = vpop.permute.xlu0 %212
    %214 = vrot.lane.b32.xlu0 %v179, 124
    %v215 = vpop.permute.xlu0 %214
    %216 = vrot.lane.b32.xlu0 %v180, 124
    %v217 = vpop.permute.xlu0 %216
    %218 = vrot.lane.b32.xlu0 %v181, 124
    %v219 = vpop.permute.xlu0 %218
    %221 = vset.pattern.permute.xlu0 64
    %222 = vperm.xlu0 %221, %v186
    %v223 = vpop.permute.xlu0 %222
    %226 = vset.pattern.permute.xlu0 64
    %227 = vperm.xlu0 %226, %v187
    %v228 = vpop.permute.xlu0 %227
    %vm230 = vcmask 261120
    %v232 = vsel %vm230, %v183, 0
    %v235 = vsel %vm230, %v185, 0
    %237 = vmatprep.subr.mxu0 0.0
    %238 = vmatpush1.msra.mxu0 %v178
    %239 = vmatprep.subr.mxu0 0.0
    %240 = vmatpush1.msra.mxu0 %v179
    %241 = vmatprep.subr.mxu0 0.0
    %242 = vmatpush1.msra.mxu0 %v180
    %243 = vmatprep.subr.mxu0 0.0
    %244 = vmatpush1.msra.mxu0 %v181
    %245 = vmatprep.subr.mxu0 0.0
    %246 = vmatpush1.msra.mxu0 %v189
    %247 = vmatprep.subr.mxu0 0.0
    %248 = vmatpush1.msra.mxu0 %v191
    %249 = vmatprep.subr.mxu0 0.0
    %250 = vmatpush1.msra.mxu0 %v193
    %251 = vmatprep.subr.mxu0 0.0
    %252 = vmatpush1.msra.mxu0 %v195
    %253 = vmatprep.subr.mxu0 0.0
    %254 = vmatpush1.msra.mxu0 %v197
    %255 = vmatprep.subr.mxu0 0.0
    %256 = vmatpush1.msra.mxu0 %v199
    %257 = vmatprep.subr.mxu0 0.0
    %258 = vmatpush1.msra.mxu0 %v201
    %259 = vmatprep.subr.mxu0 0.0
    %260 = vmatpush1.msra.mxu0 %v203
    %261 = vmatprep.subr.mxu0 0.0
    %262 = vmatpush1.msra.mxu0 %v205
    %263 = vmatprep.subr.mxu0 0.0
    %264 = vmatpush1.msra.mxu0 %v207
    %265 = vmatprep.subr.mxu0 0.0
    %266 = vmatpush1.msra.mxu0 %v209
    %267 = vmatprep.subr.mxu0 0.0
    %268 = vmatpush1.msra.mxu0 %v211
    %269 = vmatprep.subr.mxu0 0.0
    %270 = vmatpush1.msra.mxu0 %v213
    %271 = vmatprep.subr.mxu0 0.0
    %272 = vmatpush1.msra.mxu0 %v215
    %273 = vmatprep.subr.mxu0 0.0
    %274 = vmatpush1.msra.mxu0 %v217
    %275 = vmatprep.subr.mxu0 0.0
    %276 = vmatpush1.msra.mxu0 %v219
    %277 = vmatprep.subr.mxu0 0.0
    %278 = vmatpush1.msra.mxu0 0.0
    %279 = vmatprep.subr.mxu0 0.0
    %280 = vmatpush1.msra.mxu0 0.0
    %281 = vmatprep.subr.mxu0 0.0
    %282 = vmatpush1.msra.mxu0 0.0
    %283 = vmatprep.subr.mxu0 0.0
    %284 = vmatpush1.msra.mxu0 0.0
    %285 = vmatprep.subr.mxu0 0.0
    %286 = vmatpush1.msra.mxu0 0.0
    %287 = vmatprep.subr.mxu0 0.0
    %288 = vmatpush1.msra.mxu0 0.0
    %289 = vmatprep.subr.mxu0 0.0
    %290 = vmatpush1.msra.mxu0 0.0
    %291 = vmatprep.subr.mxu0 0.0
    %292 = vmatpush1.msra.mxu0 0.0
    %293 = vmatprep.subr.mxu0 0.0
    %294 = vmatpush1.msra.mxu0 0.0
    %295 = vmatprep.subr.mxu0 0.0
    %296 = vmatpush1.msra.mxu0 0.0
    %297 = vmatprep.subr.mxu0 0.0
    %298 = vmatpush1.msra.mxu0 0.0
    %299 = vmatprep.subr.mxu0 0.0
    %300 = vmatpush1.msra.mxu0 0.0
    %301 = vmatprep.mubr.f32.mxu0 %v232
    %302 = vmatmul.mubr.f32.gmra.mrb[0].mxu0 %v182
    %v303 = vpop.f32.mrb[0].mxu0
    %v304 = vadd.f32 %v223, %v303
    %v305 = vpop.f32.mrb[0].mxu0
    %306 = vmatprep.mubr.f32.mxu0 %v235
    %307 = vmatmul.mubr.f32.gmra.mrb[0].mxu0 %v184
    %v308 = vpop.f32.mrb[0].mxu0
    %v309 = vadd.f32 %v228, %v308
    %v310 = vpop.f32.mrb[0].mxu0
    %311 = vdwg.mxu0
    %v312 = vmul.f32 %v304, %v61
    %v313 = vmul.f32 %v309, %v61
    %314 = vadd.xlane.f32.xlu0 %v312
    %v315 = vpop.xlane.xlu0 %314
    %316 = vadd.xlane.f32.xlu0 %v313
    %v317 = vpop.xlane.xlu0 %316
    %v318 = vmul.f32 %v312, %v304
    %v319 = vmul.f32 %v313, %v309
    %320 = vadd.xlane.f32.xlu0 %v318
    %v321 = vpop.xlane.xlu0 %320
    %322 = vadd.xlane.f32.xlu0 %v319
    %v323 = vpop.xlane.xlu0 %322
    %v324 = vmul.f32 %v315, 0.008928572
    %v325 = vmul.f32 %v317, 0.008928572
    %v326 = vmul.f32 %v321, 0.008928572
    %v327 = vmul.f32 %v323, 0.008928572
    %v328 = vmul.f32 %v324, %v324
    %v329 = vmul.f32 %v325, %v325
    %v330 = vsub.f32 %v326, %v328
    %v331 = vsub.f32 %v327, %v329
    %v332 = vsub.f32 %v304, %v324
    %v333 = vsub.f32 %v309, %v325
    %v334 = vadd.f32 %v330, 1e-05
    %v335 = vadd.f32 %v331, 1e-05
    %v336 = vrsqrt.pop %v334
    %v337 = vrsqrt.pop %v335
    %v338 = vmul.f32 %v332, %v336
    %v339 = vmul.f32 %v333, %v337
    %340 = vset.pattern.permute.xlu0 65
    %341 = vperm.xlu0 %340, %v186
    %v342 = vpop.permute.xlu0 %341
    %344 = vset.pattern.permute.xlu0 65
    %345 = vperm.xlu0 %344, %v187
    %v346 = vpop.permute.xlu0 %345
    %v348 = vmul.f32 %v338, %v342
    %v349 = vmul.f32 %v339, %v346
    %350 = vset.pattern.permute.xlu0 66
    %351 = vperm.xlu0 %350, %v186
    %v352 = vpop.permute.xlu0 %351
    %354 = vset.pattern.permute.xlu0 66
    %355 = vperm.xlu0 %354, %v187
    %v356 = vpop.permute.xlu0 %355
    %v358 = vadd.f32 %v348, %v352
    %v359 = vadd.f32 %v349, %v356
    %v360 = vmul.f32 %v358, 0.5
    %v361 = vmul.f32 %v359, 0.5
    %v362 = vtanh.pop %v360
    %v363 = vtanh.pop %v361
    %v364 = vmul.f32 %v362, 0.5
    %v365 = vmul.f32 %v363, 0.5
    %v366 = vadd.f32 %v364, 0.5
    %v367 = vadd.f32 %v365, 0.5
    %v368 = vmul.f32 %v358, %v366
    %v369 = vmul.f32 %v359, %v367
    %370 = vrot.lane.b32.xlu0 %v368, 4
    %v371 = vpop.permute.xlu0 %370
    %372 = vrot.lane.b32.xlu0 %v369, 4
    %v373 = vpop.permute.xlu0 %372
    %v374 = vmul.f32 %v371, %v64
    %v375 = vmul.f32 %v373, %v64
    %376 = vrot.lane.b32.xlu0 %v374, 127
    %v377 = vpop.permute.xlu0 %376
    %378 = vrot.lane.b32.xlu0 %v375, 127
    %v379 = vpop.permute.xlu0 %378
    %380 = vrot.lane.b32.xlu0 %v374, 126
    %v381 = vpop.permute.xlu0 %380
    %382 = vrot.lane.b32.xlu0 %v375, 126
    %v383 = vpop.permute.xlu0 %382
    %384 = vrot.lane.b32.xlu0 %v374, 125
    %v385 = vpop.permute.xlu0 %384
    %386 = vrot.lane.b32.xlu0 %v375, 125
    %v387 = vpop.permute.xlu0 %386
    %388 = vrot.lane.b32.xlu0 %v374, 124
    %v389 = vpop.permute.xlu0 %388
    %390 = vrot.lane.b32.xlu0 %v375, 124
    %v391 = vpop.permute.xlu0 %390
    %392 = vset.pattern.permute.xlu0 67
    %393 = vperm.xlu0 %392, %v186
    %v394 = vpop.permute.xlu0 %393
    %396 = vset.pattern.permute.xlu0 67
    %397 = vperm.xlu0 %396, %v187
    %v398 = vpop.permute.xlu0 %397
    %400 = vrot.lane.b32.xlu0 %v183, 96
    %v401 = vpop.permute.xlu0 %400
    %402 = vrot.lane.b32.xlu0 %v185, 96
    %v403 = vpop.permute.xlu0 %402
    %vm404 = vcmask 654336
    %v405 = vsel %vm404, %v401, 0
    %v407 = vsel %vm404, %v403, 0
    %409 = vmatprep.subr.mxu0 0.0
    %410 = vmatpush1.msra.mxu0 %v374
    %411 = vmatprep.subr.mxu0 0.0
    %412 = vmatpush1.msra.mxu0 %v375
    %413 = vmatprep.subr.mxu0 0.0
    %414 = vmatpush1.msra.mxu0 %v377
    %415 = vmatprep.subr.mxu0 0.0
    %416 = vmatpush1.msra.mxu0 %v379
    %417 = vmatprep.subr.mxu0 0.0
    %418 = vmatpush1.msra.mxu0 %v381
    %419 = vmatprep.subr.mxu0 0.0
    %420 = vmatpush1.msra.mxu0 %v383
    %421 = vmatprep.subr.mxu0 0.0
    %422 = vmatpush1.msra.mxu0 %v385
    %423 = vmatprep.subr.mxu0 0.0
    %424 = vmatpush1.msra.mxu0 %v387
    %425 = vmatprep.subr.mxu0 0.0
    %426 = vmatpush1.msra.mxu0 %v389
    %427 = vmatprep.subr.mxu0 0.0
    %428 = vmatpush1.msra.mxu0 %v391
    %429 = vmatprep.subr.mxu0 0.0
    %430 = vmatpush1.msra.mxu0 0.0
    %431 = vmatprep.subr.mxu0 0.0
    %432 = vmatpush1.msra.mxu0 0.0
    %433 = vmatprep.subr.mxu0 0.0
    %434 = vmatpush1.msra.mxu0 0.0
    %435 = vmatprep.subr.mxu0 0.0
    %436 = vmatpush1.msra.mxu0 0.0
    %437 = vmatprep.subr.mxu0 0.0
    %438 = vmatpush1.msra.mxu0 0.0
    %439 = vmatprep.subr.mxu0 0.0
    %440 = vmatpush1.msra.mxu0 0.0
    %441 = vmatprep.subr.mxu0 0.0
    %442 = vmatpush1.msra.mxu0 0.0
    %443 = vmatprep.subr.mxu0 0.0
    %444 = vmatpush1.msra.mxu0 0.0
    %445 = vmatprep.subr.mxu0 0.0
    %446 = vmatpush1.msra.mxu0 0.0
    %447 = vmatprep.subr.mxu0 0.0
    %448 = vmatpush1.msra.mxu0 0.0
    %449 = vmatprep.subr.mxu0 0.0
    %450 = vmatpush1.msra.mxu0 0.0
    %451 = vmatprep.subr.mxu0 0.0
    %452 = vmatpush1.msra.mxu0 0.0
    %453 = vmatprep.subr.mxu0 0.0
    %454 = vmatpush1.msra.mxu0 0.0
    %455 = vmatprep.subr.mxu0 0.0
    %456 = vmatpush1.msra.mxu0 0.0
    %457 = vmatprep.subr.mxu0 0.0
    %458 = vmatpush1.msra.mxu0 0.0
    %459 = vmatprep.subr.mxu0 0.0
    %460 = vmatpush1.msra.mxu0 0.0
    %461 = vmatprep.subr.mxu0 0.0
    %462 = vmatpush1.msra.mxu0 0.0
    %463 = vmatprep.subr.mxu0 0.0
    %464 = vmatpush1.msra.mxu0 0.0
    %465 = vmatprep.subr.mxu0 0.0
    %466 = vmatpush1.msra.mxu0 0.0
    %467 = vmatprep.subr.mxu0 0.0
    %468 = vmatpush1.msra.mxu0 0.0
    %469 = vmatprep.subr.mxu0 0.0
    %470 = vmatpush1.msra.mxu0 0.0
    %471 = vmatprep.subr.mxu0 0.0
    %472 = vmatpush1.msra.mxu0 0.0
    %473 = vmatprep.mubr.f32.mxu0 0.0
    %474 = vmatmul.mubr.f32.gmra.mrb[0].mxu0 %v405
    %v475 = vpop.f32.mrb[0].mxu0
    %v476 = vadd.f32 %v394, %v475
    %v477 = vpop.f32.mrb[0].mxu0
    %478 = vmatprep.mubr.f32.mxu0 0.0
    %479 = vmatmul.mubr.f32.gmra.mrb[0].mxu0 %v407
    %v480 = vpop.f32.mrb[0].mxu0
    %v481 = vadd.f32 %v398, %v480
    %v482 = vpop.f32.mrb[0].mxu0
    %483 = vdwg.mxu0
    %v484 = vmul.f32 %v476, %v61
    %v485 = vmul.f32 %v481, %v61
    %486 = vadd.xlane.f32.xlu0 %v484
    %v487 = vpop.xlane.xlu0 %486
    %488 = vadd.xlane.f32.xlu0 %v485
    %v489 = vpop.xlane.xlu0 %488
    %v490 = vmul.f32 %v484, %v476
    %v491 = vmul.f32 %v485, %v481
    %492 = vadd.xlane.f32.xlu0 %v490
    %v493 = vpop.xlane.xlu0 %492
    %494 = vadd.xlane.f32.xlu0 %v491
    %v495 = vpop.xlane.xlu0 %494
    %v496 = vmul.f32 %v487, 0.008928572
    %v497 = vmul.f32 %v489, 0.008928572
    %v498 = vmul.f32 %v493, 0.008928572
    %v499 = vmul.f32 %v495, 0.008928572
    %v500 = vmul.f32 %v496, %v496
    %v501 = vmul.f32 %v497, %v497
    %v502 = vsub.f32 %v498, %v500
    %v503 = vsub.f32 %v499, %v501
    %v504 = vsub.f32 %v476, %v496
    %v505 = vsub.f32 %v481, %v497
    %v506 = vadd.f32 %v502, 1e-05
    %v507 = vadd.f32 %v503, 1e-05
    %v508 = vrsqrt.pop %v506
    %v509 = vrsqrt.pop %v507
    %v510 = vmul.f32 %v504, %v508
    %v511 = vmul.f32 %v505, %v509
    %512 = vset.pattern.permute.xlu0 68
    %513 = vperm.xlu0 %512, %v186
    %v514 = vpop.permute.xlu0 %513
    %516 = vset.pattern.permute.xlu0 68
    %517 = vperm.xlu0 %516, %v187
    %v518 = vpop.permute.xlu0 %517
    %v520 = vmul.f32 %v510, %v514
    %v521 = vmul.f32 %v511, %v518
    %522 = vset.pattern.permute.xlu0 69
    %523 = vperm.xlu0 %522, %v186
    %v524 = vpop.permute.xlu0 %523
    %526 = vset.pattern.permute.xlu0 69
    %527 = vperm.xlu0 %526, %v187
    %v528 = vpop.permute.xlu0 %527
    %v530 = vadd.f32 %v520, %v524
    %v531 = vadd.f32 %v521, %v528
    %v532 = vmul.f32 %v530, 0.5
    %v533 = vmul.f32 %v531, 0.5
    %v534 = vtanh.pop %v532
    %v535 = vtanh.pop %v533
    %v536 = vmul.f32 %v534, 0.5
    %v537 = vmul.f32 %v535, 0.5
    %v538 = vadd.f32 %v536, 0.5
    %v539 = vadd.f32 %v537, 0.5
    %v540 = vmul.f32 %v530, %v538
    %v541 = vmul.f32 %v531, %v539
    %542 = vrot.lane.b32.xlu0 %v540, 4
    %v543 = vpop.permute.xlu0 %542
    %544 = vrot.lane.b32.xlu0 %v541, 4
    %v545 = vpop.permute.xlu0 %544
    %v546 = vmul.f32 %v543, %v64
    %v547 = vmul.f32 %v545, %v64
    %548 = vrot.lane.b32.xlu0 %v546, 127
    %v549 = vpop.permute.xlu0 %548
    %550 = vrot.lane.b32.xlu0 %v547, 127
    %v551 = vpop.permute.xlu0 %550
    %552 = vrot.lane.b32.xlu0 %v546, 126
    %v553 = vpop.permute.xlu0 %552
    %554 = vrot.lane.b32.xlu0 %v547, 126
    %v555 = vpop.permute.xlu0 %554
    %556 = vrot.lane.b32.xlu0 %v546, 125
    %v557 = vpop.permute.xlu0 %556
    %558 = vrot.lane.b32.xlu0 %v547, 125
    %v559 = vpop.permute.xlu0 %558
    %560 = vrot.lane.b32.xlu0 %v546, 124
    %v561 = vpop.permute.xlu0 %560
    %562 = vrot.lane.b32.xlu0 %v547, 124
    %v563 = vpop.permute.xlu0 %562
    %564 = vset.pattern.permute.xlu0 70
    %565 = vperm.xlu0 %564, %v186
    %v566 = vpop.permute.xlu0 %565
    %568 = vset.pattern.permute.xlu0 70
    %569 = vperm.xlu0 %568, %v187
    %v570 = vpop.permute.xlu0 %569
    %572 = vrot.lane.b32.xlu0 %v183, 16
    %v573 = vpop.permute.xlu0 %572
    %574 = vrot.lane.b32.xlu0 %v186, 16
    %v575 = vpop.permute.xlu0 %574
    %576 = vrot.lane.b32.xlu0 %v185, 16
    %v577 = vpop.permute.xlu0 %576
    %578 = vrot.lane.b32.xlu0 %v187, 16
    %v579 = vpop.permute.xlu0 %578
    %vm580 = vcmask 130048
    %v581 = vsel %vm580, %v573, %v575
    %v582 = vsel %vm580, %v577, %v579
    %v583 = vsel %vm404, %v581, 0
    %v585 = vsel %vm404, %v582, 0
    %587 = vmatprep.subr.mxu0 0.0
    %588 = vmatpush1.msra.mxu0 %v546
    %589 = vmatprep.subr.mxu0 0.0
    %590 = vmatpush1.msra.mxu0 %v547
    %591 = vmatprep.subr.mxu0 0.0
    %592 = vmatpush1.msra.mxu0 %v549
    %593 = vmatprep.subr.mxu0 0.0
    %594 = vmatpush1.msra.mxu0 %v551
    %595 = vmatprep.subr.mxu0 0.0
    %596 = vmatpush1.msra.mxu0 %v553
    %597 = vmatprep.subr.mxu0 0.0
    %598 = vmatpush1.msra.mxu0 %v555
    %599 = vmatprep.subr.mxu0 0.0
    %600 = vmatpush1.msra.mxu0 %v557
    %601 = vmatprep.subr.mxu0 0.0
    %602 = vmatpush1.msra.mxu0 %v559
    %603 = vmatprep.subr.mxu0 0.0
    %604 = vmatpush1.msra.mxu0 %v561
    %605 = vmatprep.subr.mxu0 0.0
    %606 = vmatpush1.msra.mxu0 %v563
    %607 = vmatprep.subr.mxu0 0.0
    %608 = vmatpush1.msra.mxu0 0.0
    %609 = vmatprep.subr.mxu0 0.0
    %610 = vmatpush1.msra.mxu0 0.0
    %611 = vmatprep.subr.mxu0 0.0
    %612 = vmatpush1.msra.mxu0 0.0
    %613 = vmatprep.subr.mxu0 0.0
    %614 = vmatpush1.msra.mxu0 0.0
    %615 = vmatprep.subr.mxu0 0.0
    %616 = vmatpush1.msra.mxu0 0.0
    %617 = vmatprep.subr.mxu0 0.0
    %618 = vmatpush1.msra.mxu0 0.0
    %619 = vmatprep.subr.mxu0 0.0
    %620 = vmatpush1.msra.mxu0 0.0
    %621 = vmatprep.subr.mxu0 0.0
    %622 = vmatpush1.msra.mxu0 0.0
    %623 = vmatprep.subr.mxu0 0.0
    %624 = vmatpush1.msra.mxu0 0.0
    %625 = vmatprep.subr.mxu0 0.0
    %626 = vmatpush1.msra.mxu0 0.0
    %627 = vmatprep.subr.mxu0 0.0
    %628 = vmatpush1.msra.mxu0 0.0
    %629 = vmatprep.subr.mxu0 0.0
    %630 = vmatpush1.msra.mxu0 0.0
    %631 = vmatprep.subr.mxu0 0.0
    %632 = vmatpush1.msra.mxu0 0.0
    %633 = vmatprep.subr.mxu0 0.0
    %634 = vmatpush1.msra.mxu0 0.0
    %635 = vmatprep.subr.mxu0 0.0
    %636 = vmatpush1.msra.mxu0 0.0
    %637 = vmatprep.subr.mxu0 0.0
    %638 = vmatpush1.msra.mxu0 0.0
    %639 = vmatprep.subr.mxu0 0.0
    %640 = vmatpush1.msra.mxu0 0.0
    %641 = vmatprep.subr.mxu0 0.0
    %642 = vmatpush1.msra.mxu0 0.0
    %643 = vmatprep.subr.mxu0 0.0
    %644 = vmatpush1.msra.mxu0 0.0
    %645 = vmatprep.subr.mxu0 0.0
    %646 = vmatpush1.msra.mxu0 0.0
    %647 = vmatprep.subr.mxu0 0.0
    %648 = vmatpush1.msra.mxu0 0.0
    %649 = vmatprep.subr.mxu0 0.0
    %650 = vmatpush1.msra.mxu0 0.0
    %651 = vmatprep.mubr.f32.mxu0 0.0
    %652 = vmatmul.mubr.f32.gmra.mrb[0].mxu0 %v583
    %v653 = vpop.f32.mrb[0].mxu0
    %v654 = vadd.f32 %v566, %v653
    %v655 = vpop.f32.mrb[0].mxu0
    %656 = vmatprep.mubr.f32.mxu0 0.0
    %657 = vmatmul.mubr.f32.gmra.mrb[0].mxu0 %v585
    %v658 = vpop.f32.mrb[0].mxu0
    %v659 = vadd.f32 %v570, %v658
    %v660 = vpop.f32.mrb[0].mxu0
    %661 = vdwg.mxu0
    %v662 = vadd.f32 %v304, %v654
    %v663 = vadd.f32 %v309, %v659
    %v664 = vmul.f32 %v662, %v61
    %v665 = vmul.f32 %v663, %v61
    %666 = vadd.xlane.f32.xlu0 %v664
    %v667 = vpop.xlane.xlu0 %666
    %668 = vadd.xlane.f32.xlu0 %v665
    %v669 = vpop.xlane.xlu0 %668
    %v670 = vmul.f32 %v664, %v662
    %v671 = vmul.f32 %v665, %v663
    %672 = vadd.xlane.f32.xlu0 %v670
    %v673 = vpop.xlane.xlu0 %672
    %674 = vadd.xlane.f32.xlu0 %v671
    %v675 = vpop.xlane.xlu0 %674
    %v676 = vmul.f32 %v667, 0.008928572
    %v677 = vmul.f32 %v669, 0.008928572
    %v678 = vmul.f32 %v673, 0.008928572
    %v679 = vmul.f32 %v675, 0.008928572
    %v680 = vmul.f32 %v676, %v676
    %v681 = vmul.f32 %v677, %v677
    %v682 = vsub.f32 %v678, %v680
    %v683 = vsub.f32 %v679, %v681
    %v684 = vsub.f32 %v662, %v676
    %v685 = vsub.f32 %v663, %v677
    %v686 = vadd.f32 %v682, 1e-05
    %v687 = vadd.f32 %v683, 1e-05
    %v688 = vrsqrt.pop %v686
    %v689 = vrsqrt.pop %v687
    %v690 = vmul.f32 %v684, %v688
    %v691 = vmul.f32 %v685, %v689
    %692 = vset.pattern.permute.xlu0 71
    %693 = vperm.xlu0 %692, %v186
    %v694 = vpop.permute.xlu0 %693
    %696 = vset.pattern.permute.xlu0 71
    %697 = vperm.xlu0 %696, %v187
    %v698 = vpop.permute.xlu0 %697
    %v700 = vmul.f32 %v690, %v694
    %v701 = vmul.f32 %v691, %v698
    %702 = vset.pattern.permute.xlu0 72
    %703 = vperm.xlu0 %702, %v186
    %v704 = vpop.permute.xlu0 %703
    %706 = vset.pattern.permute.xlu0 72
    %707 = vperm.xlu0 %706, %v187
    %v708 = vpop.permute.xlu0 %707
    %v710 = vadd.f32 %v700, %v704
    %v711 = vadd.f32 %v701, %v708
    %v712 = vmul.f32 %v710, 0.5
    %v713 = vmul.f32 %v711, 0.5
    %v714 = vtanh.pop %v712
    %v715 = vtanh.pop %v713
    %v716 = vmul.f32 %v714, 0.5
    %v717 = vmul.f32 %v715, 0.5
    %v718 = vadd.f32 %v716, 0.5
    %v719 = vadd.f32 %v717, 0.5
    %v720 = vmul.f32 %v710, %v718
    %v721 = vmul.f32 %v711, %v719
    %722 = vrot.lane.b32.xlu0 %v720, 4
    %v723 = vpop.permute.xlu0 %722
    %724 = vrot.lane.b32.xlu0 %v721, 4
    %v725 = vpop.permute.xlu0 %724
    %v726 = vmul.f32 %v723, %v64
    %v727 = vmul.f32 %v725, %v64
    %v728 = vld [vmem:[#allocation6] sm:$0xff]
    %v729 = vld [vmem:[#allocation6 + $0x8] sm:$0xff]
    %730 = vrot.lane.b32.xlu0 %v726, 127
    %v731 = vpop.permute.xlu0 %730
    %732 = vrot.lane.b32.xlu0 %v727, 127
    %v733 = vpop.permute.xlu0 %732
    %734 = vrot.lane.b32.xlu0 %v726, 126
    %v735 = vpop.permute.xlu0 %734
    %736 = vrot.lane.b32.xlu0 %v727, 126
    %v737 = vpop.permute.xlu0 %736
    %738 = vrot.lane.b32.xlu0 %v726, 125
    %v739 = vpop.permute.xlu0 %738
    %740 = vrot.lane.b32.xlu0 %v727, 125
    %v741 = vpop.permute.xlu0 %740
    %742 = vrot.lane.b32.xlu0 %v726, 124
    %v743 = vpop.permute.xlu0 %742
    %744 = vrot.lane.b32.xlu0 %v727, 124
    %v745 = vpop.permute.xlu0 %744
    %747 = vset.pattern.permute.xlu0 32
    %748 = vperm.xlu0 %747, %v729
    %v749 = vpop.permute.xlu0 %748
    %v752 = vsel %vm404, %v728, 0
    %754 = vmatprep.subr.mxu0 0.0
    %755 = vmatpush1.msra.mxu0 %v726
    %756 = vmatprep.subr.mxu0 0.0
    %757 = vmatpush1.msra.mxu0 %v727
    %758 = vmatprep.subr.mxu0 0.0
    %759 = vmatpush1.msra.mxu0 %v731
    %760 = vmatprep.subr.mxu0 0.0
    %761 = vmatpush1.msra.mxu0 %v733
    %762 = vmatprep.subr.mxu0 0.0
    %763 = vmatpush1.msra.mxu0 %v735
    %764 = vmatprep.subr.mxu0 0.0
    %765 = vmatpush1.msra.mxu0 %v737
    %766 = vmatprep.subr.mxu0 0.0
    %767 = vmatpush1.msra.mxu0 %v739
    %768 = vmatprep.subr.mxu0 0.0
    %769 = vmatpush1.msra.mxu0 %v741
    %770 = vmatprep.subr.mxu0 0.0
    %771 = vmatpush1.msra.mxu0 %v743
    %772 = vmatprep.subr.mxu0 0.0
    %773 = vmatpush1.msra.mxu0 %v745
    %774 = vmatprep.subr.mxu0 0.0
    %775 = vmatpush1.msra.mxu0 0.0
    %776 = vmatprep.subr.mxu0 0.0
    %777 = vmatpush1.msra.mxu0 0.0
    %778 = vmatprep.subr.mxu0 0.0
    %779 = vmatpush1.msra.mxu0 0.0
    %780 = vmatprep.subr.mxu0 0.0
    %781 = vmatpush1.msra.mxu0 0.0
    %782 = vmatprep.subr.mxu0 0.0
    %783 = vmatpush1.msra.mxu0 0.0
    %784 = vmatprep.subr.mxu0 0.0
    %785 = vmatpush1.msra.mxu0 0.0
    %786 = vmatprep.subr.mxu0 0.0
    %787 = vmatpush1.msra.mxu0 0.0
    %788 = vmatprep.subr.mxu0 0.0
    %789 = vmatpush1.msra.mxu0 0.0
    %790 = vmatprep.subr.mxu0 0.0
    %791 = vmatpush1.msra.mxu0 0.0
    %792 = vmatprep.subr.mxu0 0.0
    %793 = vmatpush1.msra.mxu0 0.0
    %794 = vmatprep.subr.mxu0 0.0
    %795 = vmatpush1.msra.mxu0 0.0
    %796 = vmatprep.subr.mxu0 0.0
    %797 = vmatpush1.msra.mxu0 0.0
    %798 = vmatprep.subr.mxu0 0.0
    %799 = vmatpush1.msra.mxu0 0.0
    %800 = vmatprep.subr.mxu0 0.0
    %801 = vmatpush1.msra.mxu0 0.0
    %802 = vmatprep.subr.mxu0 0.0
    %803 = vmatpush1.msra.mxu0 0.0
    %804 = vmatprep.subr.mxu0 0.0
    %805 = vmatpush1.msra.mxu0 0.0
    %806 = vmatprep.subr.mxu0 0.0
    %807 = vmatpush1.msra.mxu0 0.0
    %808 = vmatprep.subr.mxu0 0.0
    %809 = vmatpush1.msra.mxu0 0.0
    %810 = vmatprep.subr.mxu0 0.0
    %811 = vmatpush1.msra.mxu0 0.0
    %812 = vmatprep.subr.mxu0 0.0
    %813 = vmatpush1.msra.mxu0 0.0
    %814 = vmatprep.subr.mxu0 0.0
    %815 = vmatpush1.msra.mxu0 0.0
    %816 = vmatprep.subr.mxu0 0.0
    %817 = vmatpush1.msra.mxu0 0.0
    %818 = vmatprep.mubr.f32.mxu0 0.0
    %819 = vmatmul.mubr.f32.gmra.mrb[0].mxu0 %v752
    %v820 = vpop.f32.mrb[0].mxu0
    %v821 = vadd.f32 %v749, %v820
    %v822 = vpop.f32.mrb[0].mxu0
    %823 = vdwg.mxu0
    %v824 = vmul.f32 %v821, %v61
    %825 = vadd.xlane.f32.xlu0 %v824
    %v826 = vpop.xlane.xlu0 %825
    %v827 = vmul.f32 %v824, %v821
    %828 = vadd.xlane.f32.xlu0 %v827
    %v829 = vpop.xlane.xlu0 %828
    %v830 = vmul.f32 %v826, 0.008928572
    %v831 = vmul.f32 %v829, 0.008928572
    %v832 = vmul.f32 %v830, %v830
    %v833 = vsub.f32 %v831, %v832
    %v834 = vsub.f32 %v821, %v830
    %v835 = vadd.f32 %v833, 1e-05
    %v836 = vrsqrt.pop %v835
    %v837 = vmul.f32 %v834, %v836
    %838 = vset.pattern.permute.xlu0 33
    %839 = vperm.xlu0 %838, %v729
    %v840 = vpop.permute.xlu0 %839
    %v842 = vmul.f32 %v837, %v840
    %843 = vset.pattern.permute.xlu0 34
    %844 = vperm.xlu0 %843, %v729
    %v845 = vpop.permute.xlu0 %844
    %v847 = vadd.f32 %v842, %v845
    %v848 = vmul.f32 %v847, 0.5
    %v849 = vtanh.pop %v848
    %v850 = vmul.f32 %v849, 0.5
    %v851 = vadd.f32 %v850, 0.5
    %v852 = vmul.f32 %v847, %v851
    %853 = vrot.lane.b32.xlu0 %v852, 4
    %v854 = vpop.permute.xlu0 %853
    %v855 = vmul.f32 %v854, %v64
    %856 = vrot.lane.b32.xlu0 %v855, 127
    %v857 = vpop.permute.xlu0 %856
    %858 = vrot.lane.b32.xlu0 %v855, 126
    %v859 = vpop.permute.xlu0 %858
    %860 = vrot.lane.b32.xlu0 %v855, 125
    %v861 = vpop.permute.xlu0 %860
    %862 = vrot.lane.b32.xlu0 %v855, 124
    %v863 = vpop.permute.xlu0 %862
    %864 = vset.pattern.permute.xlu0 35
    %865 = vperm.xlu0 %864, %v729
    %v866 = vpop.permute.xlu0 %865
    %868 = vrot.lane.b32.xlu0 %v728, 48
    %v869 = vpop.permute.xlu0 %868
    %vm870 = vcmask 326656
    %v871 = vsel %vm870, %v869, 0
    %873 = vmatprep.subr.mxu0 0.0
    %874 = vmatpush1.msra.mxu0 %v855
    %875 = vmatprep.subr.mxu0 0.0
    %876 = vmatpush1.msra.mxu0 %v857
    %877 = vmatprep.subr.mxu0 0.0
    %878 = vmatpush1.msra.mxu0 %v859
    %879 = vmatprep.subr.mxu0 0.0
    %880 = vmatpush1.msra.mxu0 %v861
    %881 = vmatprep.subr.mxu0 0.0
    %882 = vmatpush1.msra.mxu0 %v863
    %883 = vmatprep.subr.mxu0 0.0
    %884 = vmatpush1.msra.mxu0 0.0
    %885 = vmatprep.subr.mxu0 0.0
    %886 = vmatpush1.msra.mxu0 0.0
    %887 = vmatprep.subr.mxu0 0.0
    %888 = vmatpush1.msra.mxu0 0.0
    %889 = vmatprep.subr.mxu0 0.0
    %890 = vmatpush1.msra.mxu0 0.0
    %891 = vmatprep.subr.mxu0 0.0
    %892 = vmatpush1.msra.mxu0 0.0
    %893 = vmatprep.subr.mxu0 0.0
    %894 = vmatpush1.msra.mxu0 0.0
    %895 = vmatprep.subr.mxu0 0.0
    %896 = vmatpush1.msra.mxu0 0.0
    %897 = vmatprep.subr.mxu0 0.0
    %898 = vmatpush1.msra.mxu0 0.0
    %899 = vmatprep.subr.mxu0 0.0
    %900 = vmatpush1.msra.mxu0 0.0
    %901 = vmatprep.subr.mxu0 0.0
    %902 = vmatpush1.msra.mxu0 0.0
    %903 = vmatprep.subr.mxu0 0.0
    %904 = vmatpush1.msra.mxu0 0.0
    %905 = vmatprep.subr.mxu0 0.0
    %906 = vmatpush1.msra.mxu0 0.0
    %907 = vmatprep.subr.mxu0 0.0
    %908 = vmatpush1.msra.mxu0 0.0
    %909 = vmatprep.subr.mxu0 0.0
    %910 = vmatpush1.msra.mxu0 0.0
    %911 = vmatprep.subr.mxu0 0.0
    %912 = vmatpush1.msra.mxu0 0.0
    %913 = vmatprep.subr.mxu0 0.0
    %914 = vmatpush1.msra.mxu0 0.0
    %915 = vmatprep.subr.mxu0 0.0
    %916 = vmatpush1.msra.mxu0 0.0
    %917 = vmatprep.subr.mxu0 0.0
    %918 = vmatpush1.msra.mxu0 0.0
    %919 = vmatprep.subr.mxu0 0.0
    %920 = vmatpush1.msra.mxu0 0.0
    %921 = vmatprep.subr.mxu0 0.0
    %922 = vmatpush1.msra.mxu0 0.0
    %923 = vmatprep.subr.mxu0 0.0
    %924 = vmatpush1.msra.mxu0 0.0
    %925 = vmatprep.subr.mxu0 0.0
    %926 = vmatpush1.msra.mxu0 0.0
    %927 = vmatprep.subr.mxu0 0.0
    %928 = vmatpush1.msra.mxu0 0.0
    %929 = vmatprep.subr.mxu0 0.0
    %930 = vmatpush1.msra.mxu0 0.0
    %931 = vmatprep.subr.mxu0 0.0
    %932 = vmatpush1.msra.mxu0 0.0
    %933 = vmatprep.subr.mxu0 0.0
    %934 = vmatpush1.msra.mxu0 0.0
    %935 = vmatprep.subr.mxu0 0.0
    %936 = vmatpush1.msra.mxu0 0.0
    %937 = vmatprep.mubr.f32.mxu0 0.0
    %938 = vmatmul.mubr.f32.gmra.mrb[0].mxu0 %v871
    %v939 = vpop.f32.mrb[0].mxu0
    %v940 = vadd.f32 %v866, %v939
    %v941 = vpop.f32.mrb[0].mxu0
    %942 = vdwg.mxu0
    %v943 = vmul.f32 %v940, %v61
    %944 = vadd.xlane.f32.xlu0 %v943
    %v945 = vpop.xlane.xlu0 %944
    %v946 = vmul.f32 %v943, %v940
    %947 = vadd.xlane.f32.xlu0 %v946
    %v948 = vpop.xlane.xlu0 %947
    %v949 = vmul.f32 %v945, 0.008928572
    %v950 = vmul.f32 %v948, 0.008928572
    %v951 = vmul.f32 %v949, %v949
    %v952 = vsub.f32 %v950, %v951
    %v953 = vsub.f32 %v940, %v949
    %v954 = vadd.f32 %v952, 1e-05
    %v955 = vrsqrt.pop %v954
    %v956 = vmul.f32 %v953, %v955
    %957 = vset.pattern.permute.xlu0 36
    %958 = vperm.xlu0 %957, %v729
    %v959 = vpop.permute.xlu0 %958
    %v961 = vmul.f32 %v956, %v959
    %962 = vset.pattern.permute.xlu0 37
    %963 = vperm.xlu0 %962, %v729
    %v964 = vpop.permute.xlu0 %963
    %v966 = vadd.f32 %v961, %v964
    %v967 = vmul.f32 %v966, 0.5
    %v968 = vtanh.pop %v967
    %v969 = vmul.f32 %v968, 0.5
    %v970 = vadd.f32 %v969, 0.5
    %v971 = vmul.f32 %v966, %v970
    %972 = vrot.lane.b32.xlu0 %v971, 4
    %v973 = vpop.permute.xlu0 %972
    %v974 = vmul.f32 %v973, %v64
    %975 = vrot.lane.b32.xlu0 %v974, 127
    %v976 = vpop.permute.xlu0 %975
    %977 = vrot.lane.b32.xlu0 %v974, 126
    %v978 = vpop.permute.xlu0 %977
    %979 = vrot.lane.b32.xlu0 %v974, 125
    %v980 = vpop.permute.xlu0 %979
    %981 = vrot.lane.b32.xlu0 %v974, 124
    %v982 = vpop.permute.xlu0 %981
    %983 = vset.pattern.permute.xlu0 38
    %984 = vperm.xlu0 %983, %v729
    %v985 = vpop.permute.xlu0 %984
    %987 = vrot.lane.b32.xlu0 %v728, 8
    %v988 = vpop.permute.xlu0 %987
    %989 = vrot.lane.b32.xlu0 %v729, 8
    %v990 = vpop.permute.xlu0 %989
    %vm991 = vcmask 64512
    %v992 = vsel %vm991, %v988, %v990
    %v993 = vsel %vm870, %v992, 0
    %995 = vmatprep.subr.mxu0 0.0
    %996 = vmatpush1.msra.mxu0 %v974
    %997 = vmatprep.subr.mxu0 0.0
    %998 = vmatpush1.msra.mxu0 %v976
    %999 = vmatprep.subr.mxu0 0.0
    %1000 = vmatpush1.msra.mxu0 %v978
    %1001 = vmatprep.subr.mxu0 0.0
    %1002 = vmatpush1.msra.mxu0 %v980
    %1003 = vmatprep.subr.mxu0 0.0
    %1004 = vmatpush1.msra.mxu0 %v982
    %1005 = vmatprep.subr.mxu0 0.0
    %1006 = vmatpush1.msra.mxu0 0.0
    %1007 = vmatprep.subr.mxu0 0.0
    %1008 = vmatpush1.msra.mxu0 0.0
    %1009 = vmatprep.subr.mxu0 0.0
    %1010 = vmatpush1.msra.mxu0 0.0
    %1011 = vmatprep.subr.mxu0 0.0
    %1012 = vmatpush1.msra.mxu0 0.0
    %1013 = vmatprep.subr.mxu0 0.0
    %1014 = vmatpush1.msra.mxu0 0.0
    %1015 = vmatprep.subr.mxu0 0.0
    %1016 = vmatpush1.msra.mxu0 0.0
    %1017 = vmatprep.subr.mxu0 0.0
    %1018 = vmatpush1.msra.mxu0 0.0
    %1019 = vmatprep.subr.mxu0 0.0
    %1020 = vmatpush1.msra.mxu0 0.0
    %1021 = vmatprep.subr.mxu0 0.0
    %1022 = vmatpush1.msra.mxu0 0.0
    %1023 = vmatprep.subr.mxu0 0.0
    %1024 = vmatpush1.msra.mxu0 0.0
    %1025 = vmatprep.subr.mxu0 0.0
    %1026 = vmatpush1.msra.mxu0 0.0
    %1027 = vmatprep.subr.mxu0 0.0
    %1028 = vmatpush1.msra.mxu0 0.0
    %1029 = vmatprep.subr.mxu0 0.0
    %1030 = vmatpush1.msra.mxu0 0.0
    %1031 = vmatprep.subr.mxu0 0.0
    %1032 = vmatpush1.msra.mxu0 0.0
    %1033 = vmatprep.subr.mxu0 0.0
    %1034 = vmatpush1.msra.mxu0 0.0
    %1035 = vmatprep.subr.mxu0 0.0
    %1036 = vmatpush1.msra.mxu0 0.0
    %1037 = vmatprep.subr.mxu0 0.0
    %1038 = vmatpush1.msra.mxu0 0.0
    %1039 = vmatprep.subr.mxu0 0.0
    %1040 = vmatpush1.msra.mxu0 0.0
    %1041 = vmatprep.subr.mxu0 0.0
    %1042 = vmatpush1.msra.mxu0 0.0
    %1043 = vmatprep.subr.mxu0 0.0
    %1044 = vmatpush1.msra.mxu0 0.0
    %1045 = vmatprep.subr.mxu0 0.0
    %1046 = vmatpush1.msra.mxu0 0.0
    %1047 = vmatprep.subr.mxu0 0.0
    %1048 = vmatpush1.msra.mxu0 0.0
    %1049 = vmatprep.subr.mxu0 0.0
    %1050 = vmatpush1.msra.mxu0 0.0
    %1051 = vmatprep.subr.mxu0 0.0
    %1052 = vmatpush1.msra.mxu0 0.0
    %1053 = vmatprep.subr.mxu0 0.0
    %1054 = vmatpush1.msra.mxu0 0.0
    %1055 = vmatprep.subr.mxu0 0.0
    %1056 = vmatpush1.msra.mxu0 0.0
    %1057 = vmatprep.subr.mxu0 0.0
    %1058 = vmatpush1.msra.mxu0 0.0
    %1059 = vmatprep.mubr.f32.mxu0 0.0
    %1060 = vmatmul.mubr.f32.gmra.mrb[0].mxu0 %v993
    %v1061 = vpop.f32.mrb[0].mxu0
    %v1062 = vadd.f32 %v985, %v1061
    %v1063 = vpop.f32.mrb[0].mxu0
    %1064 = vdwg.mxu0
    %v1065 = vadd.f32 %v821, %v1062
    %v1066 = vmul.f32 %v1065, %v61
    %1067 = vadd.xlane.f32.xlu0 %v1066
    %v1068 = vpop.xlane.xlu0 %1067
    %v1069 = vmul.f32 %v1066, %v1065
    %1070 = vadd.xlane.f32.xlu0 %v1069
    %v1071 = vpop.xlane.xlu0 %1070
    %v1072 = vmul.f32 %v1068, 0.008928572
    %v1073 = vmul.f32 %v1071, 0.008928572
    %v1074 = vmul.f32 %v1072, %v1072
    %v1075 = vsub.f32 %v1073, %v1074
    %v1076 = vsub.f32 %v1065, %v1072
    %v1077 = vadd.f32 %v1075, 1e-05
    %v1078 = vrsqrt.pop %v1077
    %v1079 = vmul.f32 %v1076, %v1078
    %1080 = vset.pattern.permute.xlu0 39
    %1081 = vperm.xlu0 %1080, %v729
    %v1082 = vpop.permute.xlu0 %1081
    %v1084 = vmul.f32 %v1079, %v1082
    %1085 = vset.pattern.permute.xlu0 40
    %1086 = vperm.xlu0 %1085, %v729
    %v1087 = vpop.permute.xlu0 %1086
    %v1089 = vadd.f32 %v1084, %v1087
    %v1090 = vmul.f32 %v1089, 0.5
    %v1091 = vtanh.pop %v1090
    %v1092 = vmul.f32 %v1091, 0.5
    %v1093 = vadd.f32 %v1092, 0.5
    %v1094 = vmul.f32 %v1089, %v1093
    %1095 = vmatprep.subr.mxu0 0.0
    %1096 = vmatpush1.msra.mxu0 %v162
    %1097 = vmatprep.subr.mxu0 0.0
    %1098 = vmatpush1.msra.mxu0 %v163
    %1099 = vmatprep.subr.mxu0 0.0
    %1100 = vmatpush1.msra.mxu0 %v164
    %1101 = vmatprep.subr.mxu0 0.0
    %1102 = vmatpush1.msra.mxu0 %v165
    %1103 = vmatprep.subr.mxu0 0.0
    %1104 = vmatpush1.msra.mxu0 %v166
    %1105 = vmatprep.subr.mxu0 0.0
    %1106 = vmatpush1.msra.mxu0 %v167
    %1107 = vmatprep.subr.mxu0 0.0
    %1108 = vmatpush1.msra.mxu0 %v168
    %1109 = vmatprep.subr.mxu0 0.0
    %1110 = vmatpush1.msra.mxu0 %v169
    %1111 = vmatprep.subr.mxu0 0.0
    %1112 = vmatpush1.msra.mxu0 %v170
    %1113 = vmatprep.subr.mxu0 0.0
    %1114 = vmatpush1.msra.mxu0 %v171
    %1115 = vmatprep.subr.mxu0 0.0
    %1116 = vmatpush1.msra.mxu0 %v172
    %1117 = vmatprep.subr.mxu0 0.0
    %1118 = vmatpush1.msra.mxu0 %v173
    %1119 = vmatprep.subr.mxu0 0.0
    %1120 = vmatpush1.msra.mxu0 %v174
    %1121 = vmatprep.subr.mxu0 0.0
    %1122 = vmatpush1.msra.mxu0 %v175
    %1123 = vmatprep.subr.mxu0 0.0
    %1124 = vmatpush1.msra.mxu0 %v176
    %1125 = vmatprep.subr.mxu0 0.0
    %1126 = vmatpush1.msra.mxu0 %v177
    %1127 = vmatprep.subr.mxu0 0.0
    %1128 = vmatpush1.msra.mxu0 0.0
    %1129 = vmatprep.subr.mxu0 0.0
    %1130 = vmatpush1.msra.mxu0 0.0
    %1131 = vmatprep.subr.mxu0 0.0
    %1132 = vmatpush1.msra.mxu0 0.0
    %1133 = vmatprep.subr.mxu0 0.0
    %1134 = vmatpush1.msra.mxu0 0.0
    %1135 = vmatprep.subr.mxu0 0.0
    %1136 = vmatpush1.msra.mxu0 0.0
    %1137 = vmatprep.subr.mxu0 0.0
    %1138 = vmatpush1.msra.mxu0 0.0
    %1139 = vmatprep.subr.mxu0 0.0
    %1140 = vmatpush1.msra.mxu0 0.0
    %1141 = vmatprep.subr.mxu0 0.0
    %1142 = vmatpush1.msra.mxu0 0.0
    %1143 = vmatprep.subr.mxu0 0.0
    %1144 = vmatpush1.msra.mxu0 0.0
    %1145 = vmatprep.subr.mxu0 0.0
    %1146 = vmatpush1.msra.mxu0 0.0
    %1147 = vmatprep.subr.mxu0 0.0
    %1148 = vmatpush1.msra.mxu0 0.0
    %1149 = vmatprep.subr.mxu0 0.0
    %1150 = vmatpush1.msra.mxu0 0.0
    %1151 = vmatprep.subr.mxu0 0.0
    %1152 = vmatpush1.msra.mxu0 0.0
    %1153 = vmatprep.subr.mxu0 0.0
    %1154 = vmatpush1.msra.mxu0 0.0
    %1155 = vmatprep.subr.mxu0 0.0
    %1156 = vmatpush1.msra.mxu0 0.0
    %1157 = vmatprep.subr.mxu0 0.0
    %1158 = vmatpush1.msra.mxu0 0.0
    %1159 = vmatprep.mubr.f32.mxu0 0.0
    %1160 = vmatmul.mubr.f32.gmra.mrb[0].mxu0 %v1094
    %v1161 = vpop.f32.mrb[0].mxu0
    %v1162 = vadd.f32 0.0, %v1161
    %v1163 = vpop.f32.mrb[0].mxu0
    %1164 = vdwg.mxu0
    %v1165 = vld [vmem:[%s3] sm:$0xff]
    %1167 = vset.pattern.permute.xlu0 8
    %1168 = vperm.xlu0 %1167, %v1165
    %v1169 = vpop.permute.xlu0 %1168
    %v1171 = vsel %vm991, %v1165, 0
    %1173 = vmatprep.subr.mxu0 0.0
    %1174 = vmatpush1.msra.mxu0 %v1162
    %1175 = vmatprep.subr.mxu0 0.0
    %1176 = vmatpush1.msra.mxu0 0.0
    %1177 = vmatprep.subr.mxu0 0.0
    %1178 = vmatpush1.msra.mxu0 0.0
    %1179 = vmatprep.subr.mxu0 0.0
    %1180 = vmatpush1.msra.mxu0 0.0
    %1181 = vmatprep.subr.mxu0 0.0
    %1182 = vmatpush1.msra.mxu0 0.0
    %1183 = vmatprep.subr.mxu0 0.0
    %1184 = vmatpush1.msra.mxu0 0.0
    %1185 = vmatprep.subr.mxu0 0.0
    %1186 = vmatpush1.msra.mxu0 0.0
    %1187 = vmatprep.subr.mxu0 0.0
    %1188 = vmatpush1.msra.mxu0 0.0
    %1189 = vmatprep.subr.mxu0 0.0
    %1190 = vmatpush1.msra.mxu0 0.0
    %1191 = vmatprep.subr.mxu0 0.0
    %1192 = vmatpush1.msra.mxu0 0.0
    %1193 = vmatprep.subr.mxu0 0.0
    %1194 = vmatpush1.msra.mxu0 0.0
    %1195 = vmatprep.subr.mxu0 0.0
    %1196 = vmatpush1.msra.mxu0 0.0
    %1197 = vmatprep.subr.mxu0 0.0
    %1198 = vmatpush1.msra.mxu0 0.0
    %1199 = vmatprep.subr.mxu0 0.0
    %1200 = vmatpush1.msra.mxu0 0.0
    %1201 = vmatprep.subr.mxu0 0.0
    %1202 = vmatpush1.msra.mxu0 0.0
    %1203 = vmatprep.subr.mxu0 0.0
    %1204 = vmatpush1.msra.mxu0 0.0
    %1205 = vmatprep.subr.mxu0 0.0
    %1206 = vmatpush1.msra.mxu0 0.0
    %1207 = vmatprep.subr.mxu0 0.0
    %1208 = vmatpush1.msra.mxu0 0.0
    %1209 = vmatprep.subr.mxu0 0.0
    %1210 = vmatpush1.msra.mxu0 0.0
    %1211 = vmatprep.subr.mxu0 0.0
    %1212 = vmatpush1.msra.mxu0 0.0
    %1213 = vmatprep.subr.mxu0 0.0
    %1214 = vmatpush1.msra.mxu0 0.0
    %1215 = vmatprep.subr.mxu0 0.0
    %1216 = vmatpush1.msra.mxu0 0.0
    %1217 = vmatprep.subr.mxu0 0.0
    %1218 = vmatpush1.msra.mxu0 0.0
    %1219 = vmatprep.subr.mxu0 0.0
    %1220 = vmatpush1.msra.mxu0 0.0
    %1221 = vmatprep.subr.mxu0 0.0
    %1222 = vmatpush1.msra.mxu0 0.0
    %1223 = vmatprep.subr.mxu0 0.0
    %1224 = vmatpush1.msra.mxu0 0.0
    %1225 = vmatprep.subr.mxu0 0.0
    %1226 = vmatpush1.msra.mxu0 0.0
    %1227 = vmatprep.subr.mxu0 0.0
    %1228 = vmatpush1.msra.mxu0 0.0
    %1229 = vmatprep.subr.mxu0 0.0
    %1230 = vmatpush1.msra.mxu0 0.0
    %1231 = vmatprep.subr.mxu0 0.0
    %1232 = vmatpush1.msra.mxu0 0.0
    %1233 = vmatprep.subr.mxu0 0.0
    %1234 = vmatpush1.msra.mxu0 0.0
    %1235 = vmatprep.subr.mxu0 0.0
    %1236 = vmatpush1.msra.mxu0 0.0
    %1237 = vmatprep.mubr.f32.mxu0 0.0
    %1238 = vmatmul.mubr.f32.gmra.mrb[0].mxu0 %v1171
    %v1239 = vpop.f32.mrb[0].mxu0
    %v1240 = vadd.f32 %v1169, %v1239
    %v1241 = vpop.f32.mrb[0].mxu0
    %1242 = vdwg.mxu0
    %v1243 = vmul.f32 %v1240, 0.5
    %v1244 = vtanh.pop %v1243
    %v1245 = vmul.f32 %v1244, 0.5
    %v1246 = vadd.f32 %v1245, 0.5
    %vm1247 = vcmask 31744
    %1248 = vst.msk [vmem:[%s4] sm:$0xff] %vm1247, %v1246
    // Predicated region
    $region30: #{tpu_custom_call.1} parent=1 // pred_check
      _
    $region31: #{tpu_custom_call.1} parent=1 // pred_check_branch
      %1250 = sbr.rel (0) target = $region33
    $region32: #{tpu_custom_call.1} parent=1 // pred_region
      _
    $region33: #{tpu_custom_call.1} parent=1 // pred_fallthru
      _
    // Predicated region
    $region34: #{tpu_custom_call.1} parent=1 // pred_check
      _
    $region35: #{tpu_custom_call.1} parent=1 // pred_check_branch
      %1252 = sbr.rel (0) target = $region37
    $region36: #{tpu_custom_call.1} parent=1 // pred_region
      _
    $region37: #{tpu_custom_call.1} parent=1 // pred_fallthru
      _
    %1253 = vsyncpa [#allocation3], 1
    %1254 = vsyncpa [#allocation5], 1

</llo_original>
